<compile_context>
chip_gen: v6e
topology: v6e:2x2x1
jax: 0.10.0
libtpu: 0.0.40
codegen_flags: <defaults>
</compile_context>

<pallas_src>
import functools

import jax
import jax.numpy as jnp
from jax.experimental import pallas as pl
from jax.experimental.pallas import tpu as pltpu

N_UNITS = 128
IN_CH = 3
OUT_CH = 3


def _round_up(a, b):
    return -(-a // b) * b


# ---------------------------------------------------------------------------
# Parameter init (deterministic, mirrors kaiming_weights_init + zero_last_init)
# ---------------------------------------------------------------------------
def init_field_params(key, in_ch=IN_CH, out_ch=OUT_CH, n_units=N_UNITS,
                      zero_last=True):
    """Returns (W0,b0,W1,b1,W2,b2,W3,b3) with W as (in, out), b as (1, out)."""
    k0, k1, k2, k3 = jax.random.split(key, 4)

    def kaiming(k, fan_in, fan_out):
        # kaiming_normal_ (fan_in mode, relu gain): std = sqrt(2 / fan_in)
        std = (2.0 / fan_in) ** 0.5
        return jax.random.normal(k, (fan_in, fan_out), jnp.float32) * std

    w0 = kaiming(k0, in_ch, n_units)
    w1 = kaiming(k1, n_units, n_units)
    w2 = kaiming(k2, n_units, n_units)
    # module default: zero_last_init=True -> last weight & bias are zero
    w3 = (jnp.zeros((n_units, out_ch), jnp.float32) if zero_last
          else kaiming(k3, n_units, out_ch))
    b0 = jnp.zeros((1, n_units), jnp.float32)
    b1 = jnp.zeros((1, n_units), jnp.float32)
    b2 = jnp.zeros((1, n_units), jnp.float32)
    b3 = jnp.zeros((1, out_ch), jnp.float32)
    return (w0, b0, w1, b1, w2, b2, w3, b3)


# ---------------------------------------------------------------------------
# Pallas kernel: fused 4-layer MLP, transposed (feature-major) layout.
#   xt:   (in_ch, tile_n)            point axis on the 128-lane axis
#   wLt:  (out_L, in_L) = W_L^T      (middle layers optionally bf16)
#   bL:   (out_L, 1)                 column bias, broadcast over lanes
#   out:  (out_ch, tile_n)
# ---------------------------------------------------------------------------
def _field_mlp_kernel(xt_ref, w0t_ref, b0_ref, w1t_ref, b1_ref,
                      w2t_ref, b2_ref, w3t_ref, b3_ref, ot_ref):
    w1 = w1t_ref[...]
    w2 = w2t_ref[...]

    # layer 0: (128,3) @ (3,tile) -> (128,tile), f32
    h = jnp.dot(w0t_ref[...], xt_ref[...], preferred_element_type=jnp.float32)
    h = jnp.maximum(h + b0_ref[...], 0.0)           # bias + ReLU in f32 (VPU)

    # layers 1,2: the 128x128 layers carry ~98% of the FLOPs.  Operands may be
    # bf16 (MXU fast path on v5e/v6e/v7x); accumulation stays f32.
    h = jnp.dot(w1, h.astype(w1.dtype), preferred_element_type=jnp.float32)
    h = jnp.maximum(h + b1_ref[...], 0.0)
    h = jnp.dot(w2, h.astype(w2.dtype), preferred_element_type=jnp.float32)
    h = jnp.maximum(h + b2_ref[...], 0.0)

    # layer 3: (3,128) @ (128,tile) -> (3,tile), f32
    out = jnp.dot(w3t_ref[...], h, preferred_element_type=jnp.float32) + b3_ref[...]
    ot_ref[...] = out.astype(ot_ref.dtype)


def _pick_tile(n, tile_n):
    """Effective N-tile: lane-aligned, never bigger than needed, and keeping
    >= 2 grid steps when possible so v7x's 2 TensorCores both get work."""
    assert tile_n % 128 == 0, "tile_n must be a multiple of 128 (lane axis)"
    half = _round_up(-(-n // 2), 128)
    return max(128, min(tile_n, half))


@functools.partial(jax.jit, static_argnames=("tile_n", "use_bf16"))
def field_forward(x, params, tile_n=8192, use_bf16=True):
    """x: (N, in_ch) float32 -> (N, out_ch) float32.

    tile_n is the sweepable knob: points processed per grid step (default 8192;
    with the lane-dense layout VMEM stays < ~20 MiB even at this size on every
    TPU generation).  use_bf16 controls the precision of the two 128x128 layers.
    """
    # TODO(synk): latent-conditioned branch (latent_size is not None) not implemented;
    # the default Field config uses latent=None, which is what this kernel covers.
    (w0, b0, w1, b1, w2, b2, w3, b3) = params
    n, in_ch = x.shape
    out_ch = w3.shape[1]
    n_units = w0.shape[1]
    assert in_ch == w0.shape[0]

    tn = _pick_tile(n, tile_n)
    n_total = _round_up(n, tn)

    # Lane-dense layout: (N, 3) -> (3, N); pad only the tiny transposed array
    # (12 bytes/point) so the grid is exact.
    xt = x.T
    if n_total != n:
        xt = jnp.pad(xt, ((0, 0), (0, n_total - n)))

    mm_dtype = jnp.bfloat16 if use_bf16 else jnp.float32
    w0t = w0.T                      # (n_units, in_ch)   f32
    w1t = w1.T.astype(mm_dtype)     # (n_units, n_units) bf16/f32
    w2t = w2.T.astype(mm_dtype)     # (n_units, n_units) bf16/f32
    w3t = w3.T                      # (out_ch, n_units)  f32
    b0c, b1c, b2c, b3c = b0.T, b1.T, b2.T, b3.T   # column biases (out, 1)

    full = lambda shape: pl.BlockSpec(shape, lambda i: (0, 0))

    out_t = pl.pallas_call(
        _field_mlp_kernel,
        out_shape=jax.ShapeDtypeStruct((out_ch, n_total), jnp.float32),
        grid_spec=pltpu.PrefetchScalarGridSpec(
            num_scalar_prefetch=0,
            grid=(n_total // tn,),
            in_specs=[
                pl.BlockSpec((in_ch, tn), lambda i: (0, i)),       # x^T tile
                full((n_units, in_ch)), full((n_units, 1)),        # W0^T, b0
                full((n_units, n_units)), full((n_units, 1)),      # W1^T, b1
                full((n_units, n_units)), full((n_units, 1)),      # W2^T, b2
                full((out_ch, n_units)), full((out_ch, 1)),        # W3^T, b3
            ],
            out_specs=pl.BlockSpec((out_ch, tn), lambda i: (0, i)),
        ),
        compiler_params=pltpu.CompilerParams(
            dimension_semantics=("parallel",),
            # Raise v5e's 16 MiB scoped default; stays well below v7x's 64 MiB.
            vmem_limit_bytes=48 * 1024 * 1024,
        ),
    )(xt, w0t, b0c, w1t, b1c, w2t, b2c, w3t, b3c)

    return out_t[:, :n].T


# ---------------------------------------------------------------------------
# Pure-JAX reference (numerics mirror the kernel's dtype choices)
# ---------------------------------------------------------------------------
def field_forward_ref(x, params, use_bf16=True):
    (w0, b0, w1, b1, w2, b2, w3, b3) = params
    mm = jnp.bfloat16 if use_bf16 else jnp.float32
    h = jnp.maximum(x @ w0 + b0, 0.0)
    h = jnp.maximum(
        jnp.dot(h.astype(mm), w1.astype(mm),
                preferred_element_type=jnp.float32) + b1, 0.0)
    h = jnp.maximum(
        jnp.dot(h.astype(mm), w2.astype(mm),
                preferred_element_type=jnp.float32) + b2, 0.0)
    return h @ w3 + b3


if __name__ == "__main__":
    key = jax.random.PRNGKey(0)
    kp, kx = jax.random.split(key)

    N = 1024
    x = jax.random.normal(kx, (N, IN_CH), jnp.float32)

    # (a) module-default params: zero-initialized last layer -> output exactly 0
    params0 = init_field_params(kp)
    y0 = jax.block_until_ready(field_forward(x, params0))
    assert y0.shape == (N, OUT_CH), y0.shape
    assert jnp.allclose(y0, 0.0), "zero-init last layer must give zero output"

    # (b) non-trivially initialized last layer to exercise the full compute path
    params = init_field_params(kp, zero_last=False)
    y = jax.block_until_ready(field_forward(x, params))
    y_ref = field_forward_ref(x, params, use_bf16=True)
    assert y.shape == (N, OUT_CH), y.shape
    max_err = float(jnp.max(jnp.abs(y - y_ref)))
    assert jnp.allclose(y, y_ref, atol=2e-2, rtol=2e-2), (
        f"mismatch vs reference (max abs err {max_err})")

    print("KERNEL_OK")
</pallas_src>

<mosaic_0001>
module attributes {stable_mosaic.version = 11 : i64} {
  func.func @_field_mlp_kernel(%arg0: i32, %arg1: memref<3x512xf32, #tpu.memory_space<vmem>>, %arg2: memref<128x3xf32, #tpu.memory_space<vmem>>, %arg3: memref<128x1xf32, #tpu.memory_space<vmem>>, %arg4: memref<128x128xbf16, #tpu.memory_space<vmem>>, %arg5: memref<128x1xf32, #tpu.memory_space<vmem>>, %arg6: memref<128x128xbf16, #tpu.memory_space<vmem>>, %arg7: memref<128x1xf32, #tpu.memory_space<vmem>>, %arg8: memref<3x128xf32, #tpu.memory_space<vmem>>, %arg9: memref<3x1xf32, #tpu.memory_space<vmem>>, %arg10: memref<3x512xf32, #tpu.memory_space<vmem>>) attributes {dimension_semantics = [#tpu.dimension_semantics<parallel>], iteration_bounds = array<i64: 2>, scalar_prefetch = 0 : i64, scratch_operands = 0 : i64, tpu.core_type = #tpu.core_type<tc>, window_params = [{transform_indices = @transform_0, window_bounds = array<i64: 3, 512>}, {pipeline_mode = #tpu.pipeline_mode<synchronous>, transform_indices = @transform_1, window_bounds = array<i64: 128, 3>}, {pipeline_mode = #tpu.pipeline_mode<synchronous>, transform_indices = @transform_2, window_bounds = array<i64: 128, 1>}, {pipeline_mode = #tpu.pipeline_mode<synchronous>, transform_indices = @transform_3, window_bounds = array<i64: 128, 128>}, {pipeline_mode = #tpu.pipeline_mode<synchronous>, transform_indices = @transform_4, window_bounds = array<i64: 128, 1>}, {pipeline_mode = #tpu.pipeline_mode<synchronous>, transform_indices = @transform_5, window_bounds = array<i64: 128, 128>}, {pipeline_mode = #tpu.pipeline_mode<synchronous>, transform_indices = @transform_6, window_bounds = array<i64: 128, 1>}, {pipeline_mode = #tpu.pipeline_mode<synchronous>, transform_indices = @transform_7, window_bounds = array<i64: 3, 128>}, {pipeline_mode = #tpu.pipeline_mode<synchronous>, transform_indices = @transform_8, window_bounds = array<i64: 3, 1>}, {transform_indices = @transform_9, window_bounds = array<i64: 3, 512>}]} {
    %c0 = arith.constant 0 : index
    %c0_0 = arith.constant 0 : index
    %0 = vector.load %arg4[%c0, %c0_0] : memref<128x128xbf16, #tpu.memory_space<vmem>>, vector<128x128xbf16>
    %c0_1 = arith.constant 0 : index
    %c0_2 = arith.constant 0 : index
    %1 = vector.load %arg6[%c0_1, %c0_2] : memref<128x128xbf16, #tpu.memory_space<vmem>>, vector<128x128xbf16>
    %c0_3 = arith.constant 0 : index
    %c0_4 = arith.constant 0 : index
    %2 = vector.load %arg2[%c0_3, %c0_4] : memref<128x3xf32, #tpu.memory_space<vmem>>, vector<128x3xf32>
    %c0_5 = arith.constant 0 : index
    %c0_6 = arith.constant 0 : index
    %3 = vector.load %arg1[%c0_5, %c0_6] : memref<3x512xf32, #tpu.memory_space<vmem>>, vector<3x512xf32>
    %cst = arith.constant dense<0.000000e+00> : vector<128x512xf32>
    %4 = tpu.matmul %2, %3, %cst {dimension_numbers = #tpu.dot_dimension_numbers<[1], [0], [0], [1], [0, 0, 1, 1], [], []>} : vector<128x3xf32>, vector<3x512xf32>, vector<128x512xf32> -> vector<128x512xf32>
    %c0_7 = arith.constant 0 : index
    %c0_8 = arith.constant 0 : index
    %5 = vector.load %arg3[%c0_7, %c0_8] : memref<128x1xf32, #tpu.memory_space<vmem>>, vector<128x1xf32>
    %6 = vector.broadcast %5 : vector<128x1xf32> to vector<128x512xf32>
    %7 = arith.addf %4, %6 : vector<128x512xf32>
    %cst_9 = arith.constant 0.000000e+00 : f32
    %8 = vector.broadcast %cst_9 : f32 to vector<128x512xf32>
    %9 = arith.maximumf %7, %8 : vector<128x512xf32>
    %10 = arith.truncf %9 : vector<128x512xf32> to vector<128x512xbf16>
    %cst_10 = arith.constant dense<0.000000e+00> : vector<128x512xf32>
    %11 = tpu.matmul %0, %10, %cst_10 {dimension_numbers = #tpu.dot_dimension_numbers<[1], [0], [0], [1], [0, 0, 1, 1], [], []>} : vector<128x128xbf16>, vector<128x512xbf16>, vector<128x512xf32> -> vector<128x512xf32>
    %c0_11 = arith.constant 0 : index
    %c0_12 = arith.constant 0 : index
    %12 = vector.load %arg5[%c0_11, %c0_12] : memref<128x1xf32, #tpu.memory_space<vmem>>, vector<128x1xf32>
    %13 = vector.broadcast %12 : vector<128x1xf32> to vector<128x512xf32>
    %14 = arith.addf %11, %13 : vector<128x512xf32>
    %cst_13 = arith.constant 0.000000e+00 : f32
    %15 = vector.broadcast %cst_13 : f32 to vector<128x512xf32>
    %16 = arith.maximumf %14, %15 : vector<128x512xf32>
    %17 = arith.truncf %16 : vector<128x512xf32> to vector<128x512xbf16>
    %cst_14 = arith.constant dense<0.000000e+00> : vector<128x512xf32>
    %18 = tpu.matmul %1, %17, %cst_14 {dimension_numbers = #tpu.dot_dimension_numbers<[1], [0], [0], [1], [0, 0, 1, 1], [], []>} : vector<128x128xbf16>, vector<128x512xbf16>, vector<128x512xf32> -> vector<128x512xf32>
    %c0_15 = arith.constant 0 : index
    %c0_16 = arith.constant 0 : index
    %19 = vector.load %arg7[%c0_15, %c0_16] : memref<128x1xf32, #tpu.memory_space<vmem>>, vector<128x1xf32>
    %20 = vector.broadcast %19 : vector<128x1xf32> to vector<128x512xf32>
    %21 = arith.addf %18, %20 : vector<128x512xf32>
    %cst_17 = arith.constant 0.000000e+00 : f32
    %22 = vector.broadcast %cst_17 : f32 to vector<128x512xf32>
    %23 = arith.maximumf %21, %22 : vector<128x512xf32>
    %c0_18 = arith.constant 0 : index
    %c0_19 = arith.constant 0 : index
    %24 = vector.load %arg8[%c0_18, %c0_19] : memref<3x128xf32, #tpu.memory_space<vmem>>, vector<3x128xf32>
    %cst_20 = arith.constant dense<0.000000e+00> : vector<3x512xf32>
    %25 = tpu.matmul %24, %23, %cst_20 {dimension_numbers = #tpu.dot_dimension_numbers<[1], [0], [0], [1], [0, 0, 1, 1], [], []>} : vector<3x128xf32>, vector<128x512xf32>, vector<3x512xf32> -> vector<3x512xf32>
    %c0_21 = arith.constant 0 : index
    %c0_22 = arith.constant 0 : index
    %26 = vector.load %arg9[%c0_21, %c0_22] : memref<3x1xf32, #tpu.memory_space<vmem>>, vector<3x1xf32>
    %27 = vector.broadcast %26 : vector<3x1xf32> to vector<3x512xf32>
    %28 = arith.addf %25, %27 : vector<3x512xf32>
    %c0_23 = arith.constant 0 : index
    %c0_24 = arith.constant 0 : index
    %29 = vector.load %arg10[%c0_23, %c0_24] : memref<3x512xf32, #tpu.memory_space<vmem>>, vector<3x512xf32>
    tpu.vector_store %arg10[%c0_23, %c0_24], %28 {strides = array<i32>} : memref<3x512xf32, #tpu.memory_space<vmem>>, vector<3x512xf32>,
    return
  }
  func.func @transform_0(%arg0: i32) -> (i32, i32) {
    %c0_i32 = arith.constant 0 : i32
    %c0_i32_0 = arith.constant 0 : i32
    return %c0_i32, %arg0 : i32, i32
  }
  func.func @transform_1(%arg0: i32) -> (i32, i32) {
    %c0_i32 = arith.constant 0 : i32
    %c0_i32_0 = arith.constant 0 : i32
    %c0_i32_1 = arith.constant 0 : i32
    return %c0_i32, %c0_i32_0 : i32, i32
  }
  func.func @transform_2(%arg0: i32) -> (i32, i32) {
    %c0_i32 = arith.constant 0 : i32
    %c0_i32_0 = arith.constant 0 : i32
    %c0_i32_1 = arith.constant 0 : i32
    return %c0_i32, %c0_i32_0 : i32, i32
  }
  func.func @transform_3(%arg0: i32) -> (i32, i32) {
    %c0_i32 = arith.constant 0 : i32
    %c0_i32_0 = arith.constant 0 : i32
    %c0_i32_1 = arith.constant 0 : i32
    return %c0_i32, %c0_i32_0 : i32, i32
  }
  func.func @transform_4(%arg0: i32) -> (i32, i32) {
    %c0_i32 = arith.constant 0 : i32
    %c0_i32_0 = arith.constant 0 : i32
    %c0_i32_1 = arith.constant 0 : i32
    return %c0_i32, %c0_i32_0 : i32, i32
  }
  func.func @transform_5(%arg0: i32) -> (i32, i32) {
    %c0_i32 = arith.constant 0 : i32
    %c0_i32_0 = arith.constant 0 : i32
    %c0_i32_1 = arith.constant 0 : i32
    return %c0_i32, %c0_i32_0 : i32, i32
  }
  func.func @transform_6(%arg0: i32) -> (i32, i32) {
    %c0_i32 = arith.constant 0 : i32
    %c0_i32_0 = arith.constant 0 : i32
    %c0_i32_1 = arith.constant 0 : i32
    return %c0_i32, %c0_i32_0 : i32, i32
  }
  func.func @transform_7(%arg0: i32) -> (i32, i32) {
    %c0_i32 = arith.constant 0 : i32
    %c0_i32_0 = arith.constant 0 : i32
    %c0_i32_1 = arith.constant 0 : i32
    return %c0_i32, %c0_i32_0 : i32, i32
  }
  func.func @transform_8(%arg0: i32) -> (i32, i32) {
    %c0_i32 = arith.constant 0 : i32
    %c0_i32_0 = arith.constant 0 : i32
    %c0_i32_1 = arith.constant 0 : i32
    return %c0_i32, %c0_i32_0 : i32, i32
  }
  func.func @transform_9(%arg0: i32) -> (i32, i32) {
    %c0_i32 = arith.constant 0 : i32
    %c0_i32_0 = arith.constant 0 : i32
    return %c0_i32, %arg0 : i32, i32
  }
}

</mosaic_0001>

<llo_original>
// kernel: field_forward.1
$region0: #{field_forward.1}
  #allocation0 [shape = 'u32[]', space=smem, size = 0x4, offset = 0x4, fixed_abs, tag = 'smem constant byte address 0x4 - core index']
  #allocation1 [shape = 'u32[144,128]{1,0:T(1,128)}', space=vmem, size = 0x12000, scoped, tag = 'internal scratch']
  %s0 = inlined_call_operand.vmem [shape: f32[3,1024], index: 0, kind: input, shape index: {}]
  %s1 = inlined_call_operand.vmem [shape: f32[128,3], index: 1, kind: input, shape index: {}]
  %s2 = inlined_call_operand.vmem [shape: f32[128,1], index: 2, kind: input, shape index: {}]
  %s3 = inlined_call_operand.vmem [shape: bf16[128,128], index: 3, kind: input, shape index: {}]
  %s4 = inlined_call_operand.vmem [shape: f32[128,1], index: 4, kind: input, shape index: {}]
  %s5 = inlined_call_operand.vmem [shape: bf16[128,128], index: 5, kind: input, shape index: {}]
  %s6 = inlined_call_operand.vmem [shape: f32[128,1], index: 6, kind: input, shape index: {}]
  %s7 = inlined_call_operand.vmem [shape: f32[3,128], index: 7, kind: input, shape index: {}]
  %s8 = inlined_call_operand.vmem [shape: f32[3,1], index: 8, kind: input, shape index: {}]
  %s9 = inlined_call_operand.hbm [shape: f32[3,1024], index: 9, kind: output, shape index: {}]
  %s10 = sld [smem:[#allocation0]]
  $region69: #{field_forward.1} parent=0
    _
  %s12 = ssub.s32 1, %s10
  %s13 = scalar_select 0, %s12, %s10
  $region1: #{field_forward.1} parent=0
    #allocation2 [shape = 'u8[16384]{0}', space=vmem, size = 0x4000, scoped, tag = 'output window, operand 0']
    #allocation3 [shape = 's32[2]{0}', space=sflag, size = 0x8, scoped, tag = 'scoped memory for field_forward.1']
    %14 = vsyncpa [#allocation3], 0
    %s15 = scalar_lea.sflag [#allocation3], 1
    %16 = vsyncpa %s15, 0
    loop: start=0, step=1, limit=4
    $region2: #{field_forward.1} parent=1 // loop_pre_header
      _
    $region3: #{field_forward.1} parent=1 // loop_header
      %s18 = sphi 0, %s22
      %p19 = scmp.ge.s32.totalorder %s18, 4
      %s28 = sphi 0, %s30
      %s31 = sphi 0, %s28
      %s32 = sphi 0, %s31
      %s48 = sphi 0, %s32
      %s52 = sphi 0, %s52
      %s54 = sphi 0, %s52
      %s55 = sphi 0, %s54
      %s69 = sphi 0, %s55
      %s73 = sphi 0, %s73
      %s75 = sphi 0, %s73
      %s76 = sphi 0, %s75
      %s90 = sphi 0, %s76
      %s94 = sphi 0, %s94
      %s96 = sphi 0, %s94
      %s97 = sphi 0, %s96
      %s111 = sphi 0, %s97
      %s115 = sphi 0, %s115
      %s117 = sphi 0, %s115
      %s118 = sphi 0, %s117
      %s132 = sphi 0, %s118
      %s136 = sphi 0, %s136
      %s138 = sphi 0, %s136
      %s139 = sphi 0, %s138
      %s153 = sphi 0, %s139
      %s157 = sphi 0, %s157
      %s159 = sphi 0, %s157
      %s160 = sphi 0, %s159
      %s174 = sphi 0, %s160
      %s178 = sphi 0, %s178
      %s180 = sphi 0, %s178
      %s181 = sphi 0, %s180
      %s195 = sphi 0, %s181
      %s199 = sphi 0, %s199
      %s201 = sphi 0, %s199
      %s202 = sphi 0, %s201
      %s216 = sphi 0, %s202
      %s222 = sphi 0, %s224
      %s225 = sphi 0, %s222
      %s226 = sphi 0, %s225
      %s242 = sphi 0, %s226
    $region4: #{field_forward.1} parent=1 // loop_header_branch
      %21 = sbr.rel (%p19) target = $region8
    $region5: #{field_forward.1} parent=1 // loop_body
      %s23 = ssub.s32 %s18, 1
      %s24 = ssub.s32 %s18, 2
      %s25 = sadd.s32 %s18, 1
      %s26 = ssub.s32 %s18, %s25
      %p27 = scmp.eq.s32.totalorder %s26, 0
      %s29 = sadd.s32 %s28, 1
      %s30 = scalar_select %p27, %s28, %s29
      %p33 = pneg %p27
      %p34 = scmp.eq.s32.totalorder %s18, 1
      %p35 = por %p33, %p34
      %p36 = scmp.ne.s32.totalorder %s28, %s31
      %p37 = scmp.eq.s32.totalorder %s18, 0
      %p38 = por %p36, %p37
      %p39 = scmp.ne.s32.totalorder %s28, %s31
      %p40 = scmp.eq.s32.totalorder %s23, 1
      %p41 = por %p39, %p40
      %p42 = scmp.ne.s32.totalorder %s31, %s32
      %p43 = scmp.eq.s32.totalorder %s23, 0
      %p44 = por %p42, %p43
      %p45 = scmp.ne.s32.totalorder %s31, %s32
      %p46 = scmp.eq.s32.totalorder %s24, 1
      %p47 = por %p45, %p46
      %p49 = scmp.ne.s32.totalorder %s32, %s48
      %p50 = scmp.eq.s32.totalorder %s24, 0
      %p51 = por %p49, %p50
      %s53 = sadd.s32 %s52, 1
      %p56 = scmp.eq.s32.totalorder %s18, 1
      %p57 = scmp.ne.s32.totalorder %s52, %s54
      %p58 = scmp.eq.s32.totalorder %s18, 0
      %p59 = por %p57, %p58
      %p60 = scmp.ne.s32.totalorder %s52, %s54
      %p61 = scmp.eq.s32.totalorder %s23, 1
      %p62 = por %p60, %p61
      %p63 = scmp.ne.s32.totalorder %s54, %s55
      %p64 = scmp.eq.s32.totalorder %s23, 0
      %p65 = por %p63, %p64
      %p66 = scmp.ne.s32.totalorder %s54, %s55
      %p67 = scmp.eq.s32.totalorder %s24, 1
      %p68 = por %p66, %p67
      %p70 = scmp.ne.s32.totalorder %s55, %s69
      %p71 = scmp.eq.s32.totalorder %s24, 0
      %p72 = por %p70, %p71
      %s74 = sadd.s32 %s73, 1
      %p77 = scmp.eq.s32.totalorder %s18, 1
      %p78 = scmp.ne.s32.totalorder %s73, %s75
      %p79 = scmp.eq.s32.totalorder %s18, 0
      %p80 = por %p78, %p79
      %p81 = scmp.ne.s32.totalorder %s73, %s75
      %p82 = scmp.eq.s32.totalorder %s23, 1
      %p83 = por %p81, %p82
      %p84 = scmp.ne.s32.totalorder %s75, %s76
      %p85 = scmp.eq.s32.totalorder %s23, 0
      %p86 = por %p84, %p85
      %p87 = scmp.ne.s32.totalorder %s75, %s76
      %p88 = scmp.eq.s32.totalorder %s24, 1
      %p89 = por %p87, %p88
      %p91 = scmp.ne.s32.totalorder %s76, %s90
      %p92 = scmp.eq.s32.totalorder %s24, 0
      %p93 = por %p91, %p92
      %s95 = sadd.s32 %s94, 1
      %p98 = scmp.eq.s32.totalorder %s18, 1
      %p99 = scmp.ne.s32.totalorder %s94, %s96
      %p100 = scmp.eq.s32.totalorder %s18, 0
      %p101 = por %p99, %p100
      %p102 = scmp.ne.s32.totalorder %s94, %s96
      %p103 = scmp.eq.s32.totalorder %s23, 1
      %p104 = por %p102, %p103
      %p105 = scmp.ne.s32.totalorder %s96, %s97
      %p106 = scmp.eq.s32.totalorder %s23, 0
      %p107 = por %p105, %p106
      %p108 = scmp.ne.s32.totalorder %s96, %s97
      %p109 = scmp.eq.s32.totalorder %s24, 1
      %p110 = por %p108, %p109
      %p112 = scmp.ne.s32.totalorder %s97, %s111
      %p113 = scmp.eq.s32.totalorder %s24, 0
      %p114 = por %p112, %p113
      %s116 = sadd.s32 %s115, 1
      %p119 = scmp.eq.s32.totalorder %s18, 1
      %p120 = scmp.ne.s32.totalorder %s115, %s117
      %p121 = scmp.eq.s32.totalorder %s18, 0
      %p122 = por %p120, %p121
      %p123 = scmp.ne.s32.totalorder %s115, %s117
      %p124 = scmp.eq.s32.totalorder %s23, 1
      %p125 = por %p123, %p124
      %p126 = scmp.ne.s32.totalorder %s117, %s118
      %p127 = scmp.eq.s32.totalorder %s23, 0
      %p128 = por %p126, %p127
      %p129 = scmp.ne.s32.totalorder %s117, %s118
      %p130 = scmp.eq.s32.totalorder %s24, 1
      %p131 = por %p129, %p130
      %p133 = scmp.ne.s32.totalorder %s118, %s132
      %p134 = scmp.eq.s32.totalorder %s24, 0
      %p135 = por %p133, %p134
      %s137 = sadd.s32 %s136, 1
      %p140 = scmp.eq.s32.totalorder %s18, 1
      %p141 = scmp.ne.s32.totalorder %s136, %s138
      %p142 = scmp.eq.s32.totalorder %s18, 0
      %p143 = por %p141, %p142
      %p144 = scmp.ne.s32.totalorder %s136, %s138
      %p145 = scmp.eq.s32.totalorder %s23, 1
      %p146 = por %p144, %p145
      %p147 = scmp.ne.s32.totalorder %s138, %s139
      %p148 = scmp.eq.s32.totalorder %s23, 0
      %p149 = por %p147, %p148
      %p150 = scmp.ne.s32.totalorder %s138, %s139
      %p151 = scmp.eq.s32.totalorder %s24, 1
      %p152 = por %p150, %p151
      %p154 = scmp.ne.s32.totalorder %s139, %s153
      %p155 = scmp.eq.s32.totalorder %s24, 0
      %p156 = por %p154, %p155
      %s158 = sadd.s32 %s157, 1
      %p161 = scmp.eq.s32.totalorder %s18, 1
      %p162 = scmp.ne.s32.totalorder %s157, %s159
      %p163 = scmp.eq.s32.totalorder %s18, 0
      %p164 = por %p162, %p163
      %p165 = scmp.ne.s32.totalorder %s157, %s159
      %p166 = scmp.eq.s32.totalorder %s23, 1
      %p167 = por %p165, %p166
      %p168 = scmp.ne.s32.totalorder %s159, %s160
      %p169 = scmp.eq.s32.totalorder %s23, 0
      %p170 = por %p168, %p169
      %p171 = scmp.ne.s32.totalorder %s159, %s160
      %p172 = scmp.eq.s32.totalorder %s24, 1
      %p173 = por %p171, %p172
      %p175 = scmp.ne.s32.totalorder %s160, %s174
      %p176 = scmp.eq.s32.totalorder %s24, 0
      %p177 = por %p175, %p176
      %s179 = sadd.s32 %s178, 1
      %p182 = scmp.eq.s32.totalorder %s18, 1
      %p183 = scmp.ne.s32.totalorder %s178, %s180
      %p184 = scmp.eq.s32.totalorder %s18, 0
      %p185 = por %p183, %p184
      %p186 = scmp.ne.s32.totalorder %s178, %s180
      %p187 = scmp.eq.s32.totalorder %s23, 1
      %p188 = por %p186, %p187
      %p189 = scmp.ne.s32.totalorder %s180, %s181
      %p190 = scmp.eq.s32.totalorder %s23, 0
      %p191 = por %p189, %p190
      %p192 = scmp.ne.s32.totalorder %s180, %s181
      %p193 = scmp.eq.s32.totalorder %s24, 1
      %p194 = por %p192, %p193
      %p196 = scmp.ne.s32.totalorder %s181, %s195
      %p197 = scmp.eq.s32.totalorder %s24, 0
      %p198 = por %p196, %p197
      %s200 = sadd.s32 %s199, 1
      %p203 = scmp.eq.s32.totalorder %s18, 1
      %p204 = scmp.ne.s32.totalorder %s199, %s201
      %p205 = scmp.eq.s32.totalorder %s18, 0
      %p206 = por %p204, %p205
      %p207 = scmp.ne.s32.totalorder %s199, %s201
      %p208 = scmp.eq.s32.totalorder %s23, 1
      %p209 = por %p207, %p208
      %p210 = scmp.ne.s32.totalorder %s201, %s202
      %p211 = scmp.eq.s32.totalorder %s23, 0
      %p212 = por %p210, %p211
      %p213 = scmp.ne.s32.totalorder %s201, %s202
      %p214 = scmp.eq.s32.totalorder %s24, 1
      %p215 = por %p213, %p214
      %p217 = scmp.ne.s32.totalorder %s202, %s216
      %p218 = scmp.eq.s32.totalorder %s24, 0
      %p219 = por %p217, %p218
      %s220 = ssub.s32 %s18, %s25
      %p221 = scmp.eq.s32.totalorder %s220, 0
      %s223 = sadd.s32 %s222, 1
      %s224 = scalar_select %p221, %s222, %s223
      %p227 = pneg %p221
      %p228 = scmp.eq.s32.totalorder %s18, 1
      %p229 = por %p227, %p228
      %p230 = scmp.ne.s32.totalorder %s222, %s225
      %p231 = scmp.eq.s32.totalorder %s18, 0
      %p232 = por %p230, %p231
      %p233 = scmp.ne.s32.totalorder %s222, %s225
      %p234 = scmp.eq.s32.totalorder %s23, 1
      %p235 = por %p233, %p234
      %p236 = scmp.ne.s32.totalorder %s225, %s226
      %p237 = scmp.eq.s32.totalorder %s23, 0
      %p238 = por %p236, %p237
      %p239 = scmp.ne.s32.totalorder %s225, %s226
      %p240 = scmp.eq.s32.totalorder %s24, 1
      %p241 = por %p239, %p240
      %p243 = scmp.ne.s32.totalorder %s226, %s242
      %p244 = scmp.eq.s32.totalorder %s24, 0
      %p245 = por %p243, %p244
      %p246 = scmp.le.s32.totalorder 1, %s18
      %p247 = scmp.lt.s32.totalorder %s18, 3
      %p248 = pnand %p246, %p247
      %p249 = pneg %p248
      // Predicated region
      $region9: #{field_forward.1} parent=5 // pred_check
        _
      $region10: #{field_forward.1} parent=5 // pred_check_branch
        %251 = sbr.rel (%p248) target = $region12
      $region11: #{field_forward.1} parent=5 // pred_region
        %s252 = ssub.s32 %s18, 1
        // Predicated region
        $region13: #{field_forward.1} parent=11 // pred_check
          %p253 = pneg %p65
        $region14: #{field_forward.1} parent=11 // pred_check_branch
          %255 = sbr.rel (%p253) target = $region16
        $region15: #{field_forward.1} parent=11 // pred_region
          _
        $region16: #{field_forward.1} parent=11 // pred_fallthru
          _
        // Predicated region
        $region17: #{field_forward.1} parent=11 // pred_check
          %p256 = pneg %p86
        $region18: #{field_forward.1} parent=11 // pred_check_branch
          %258 = sbr.rel (%p256) target = $region20
        $region19: #{field_forward.1} parent=11 // pred_region
          _
        $region20: #{field_forward.1} parent=11 // pred_fallthru
          _
        // Predicated region
        $region21: #{field_forward.1} parent=11 // pred_check
          %p259 = pneg %p107
        $region22: #{field_forward.1} parent=11 // pred_check_branch
          %261 = sbr.rel (%p259) target = $region24
        $region23: #{field_forward.1} parent=11 // pred_region
          _
        $region24: #{field_forward.1} parent=11 // pred_fallthru
          _
        // Predicated region
        $region25: #{field_forward.1} parent=11 // pred_check
          %p262 = pneg %p128
        $region26: #{field_forward.1} parent=11 // pred_check_branch
          %264 = sbr.rel (%p262) target = $region28
        $region27: #{field_forward.1} parent=11 // pred_region
          _
        $region28: #{field_forward.1} parent=11 // pred_fallthru
          _
        // Predicated region
        $region29: #{field_forward.1} parent=11 // pred_check
          %p265 = pneg %p149
        $region30: #{field_forward.1} parent=11 // pred_check_branch
          %267 = sbr.rel (%p265) target = $region32
        $region31: #{field_forward.1} parent=11 // pred_region
          _
        $region32: #{field_forward.1} parent=11 // pred_fallthru
          _
        // Predicated region
        $region33: #{field_forward.1} parent=11 // pred_check
          %p268 = pneg %p170
        $region34: #{field_forward.1} parent=11 // pred_check_branch
          %270 = sbr.rel (%p268) target = $region36
        $region35: #{field_forward.1} parent=11 // pred_region
          _
        $region36: #{field_forward.1} parent=11 // pred_fallthru
          _
        // Predicated region
        $region37: #{field_forward.1} parent=11 // pred_check
          %p271 = pneg %p191
        $region38: #{field_forward.1} parent=11 // pred_check_branch
          %273 = sbr.rel (%p271) target = $region40
        $region39: #{field_forward.1} parent=11 // pred_region
          _
        $region40: #{field_forward.1} parent=11 // pred_fallthru
          _
        // Predicated region
        $region41: #{field_forward.1} parent=11 // pred_check
          %p274 = pneg %p212
        $region42: #{field_forward.1} parent=11 // pred_check_branch
          %276 = sbr.rel (%p274) target = $region44
        $region43: #{field_forward.1} parent=11 // pred_region
          _
        $region44: #{field_forward.1} parent=11 // pred_fallthru
          _
      $region12: #{field_forward.1} parent=5 // pred_fallthru
        _
      %p277 = scmp.lt.s32.totalorder %s18, 2
      // Predicated region
      $region45: #{field_forward.1} parent=5 // pred_check
        %p278 = pneg %p277
      $region46: #{field_forward.1} parent=5 // pred_check_branch
        %280 = sbr.rel (%p278) target = $region48
      $region47: #{field_forward.1} parent=5 // pred_region
        // Predicated region
        $region49: #{field_forward.1} parent=47 // pred_check
          %p281 = pneg %p38
        $region50: #{field_forward.1} parent=47 // pred_check_branch
          %283 = sbr.rel (%p281) target = $region52
        $region51: #{field_forward.1} parent=47 // pred_region
          %s284 = smul.u32 4, %s18
          %p285 = scmp.lt.s32.totalorder %s284, 7
          %s286 = scalar_select %p285, %s284, 7
          %s287 = smul.addr %s286, 4
          %s288 = scalar_lea.vmem %s0, %s287
          %s289 = smul.u32 4, %s18
        $region52: #{field_forward.1} parent=47 // pred_fallthru
          _
      $region48: #{field_forward.1} parent=5 // pred_fallthru
        _
      %p290 = scmp.le.s32.totalorder 1, %s18
      %p291 = scmp.lt.s32.totalorder %s18, 3
      %p292 = pnand %p290, %p291
      %p293 = pneg %p292
      // Predicated region
      $region53: #{field_forward.1} parent=5 // pred_check
        _
      $region54: #{field_forward.1} parent=5 // pred_check_branch
        %295 = sbr.rel (%p292) target = $region56
      $region55: #{field_forward.1} parent=5 // pred_region
        %s296 = ssub.s32 %s18, 1
        %s297 = smul.u32 4, %s23
        %p298 = scmp.lt.s32.totalorder %s297, 7
        %s299 = scalar_select %p298, %s297, 7
        %s300 = smul.addr %s299, 4
        %s301 = scalar_lea.vmem %s0, %s300
        %p302 = pneg %p44
        %p303 = pneg %p41
        %p304 = pneg %p65
        %p305 = pneg %p62
        %p306 = pneg %p86
        %p307 = pneg %p83
        %p308 = pneg %p107
        %p309 = pneg %p104
        %p310 = pneg %p128
        %p311 = pneg %p125
        %p312 = pneg %p149
        %p313 = pneg %p146
        %p314 = pneg %p170
        %p315 = pneg %p167
        %p316 = pneg %p191
        %p317 = pneg %p188
        %p318 = pneg %p212
        %p319 = pneg %p209
        %p320 = pneg %p238
        %p321 = pneg %p235
        %s322 = sand.u32 %s225, 1
        %s323 = scalar_lea.sflag [#allocation3], %s322
        %s324 = sand.u32 %s225, 1
        %s325 = smul.addr %s324, 16
        %s326 = scalar_lea.vmem [#allocation2], %s325
        %s327 = smul.u32 4, %s23
        %p328 = scmp.lt.s32.totalorder %s327, 7
        %s329 = scalar_select %p328, %s327, 7
        %s330 = smul.addr %s329, 4
        %s331 = scalar_lea.vmem %s0, %s330
        %s332 = smul.u32 4, %s23
        %s333 = smul.u32 4, %s23
        %v335 = vld [vmem:[%s3] sm:$0xf]
        %v336 = vld [vmem:[%s3 + $0x4] sm:$0xf]
        %v337 = vld [vmem:[%s3 + $0x8] sm:$0xf]
        %v338 = vld [vmem:[%s3 + $0xc] sm:$0xf]
        %v339 = vld [vmem:[%s3 + $0x10] sm:$0xf]
        %v340 = vld [vmem:[%s3 + $0x14] sm:$0xf]
        %v341 = vld [vmem:[%s3 + $0x18] sm:$0xf]
        %v342 = vld [vmem:[%s3 + $0x1c] sm:$0xf]
        %v343 = vld [vmem:[%s3 + $0x20] sm:$0xf]
        %v344 = vld [vmem:[%s3 + $0x24] sm:$0xf]
        %v345 = vld [vmem:[%s3 + $0x28] sm:$0xf]
        %v346 = vld [vmem:[%s3 + $0x2c] sm:$0xf]
        %v347 = vld [vmem:[%s3 + $0x30] sm:$0xf]
        %v348 = vld [vmem:[%s3 + $0x34] sm:$0xf]
        %v349 = vld [vmem:[%s3 + $0x38] sm:$0xf]
        %v350 = vld [vmem:[%s3 + $0x3c] sm:$0xf]
        %v351 = vld [vmem:[%s5] sm:$0xf]
        %v352 = vld [vmem:[%s5 + $0x4] sm:$0xf]
        %v353 = vld [vmem:[%s5 + $0x8] sm:$0xf]
        %v354 = vld [vmem:[%s5 + $0xc] sm:$0xf]
        %v355 = vld [vmem:[%s5 + $0x10] sm:$0xf]
        %v356 = vld [vmem:[%s5 + $0x14] sm:$0xf]
        %v357 = vld [vmem:[%s5 + $0x18] sm:$0xf]
        %v358 = vld [vmem:[%s5 + $0x1c] sm:$0xf]
        %v359 = vld [vmem:[%s5 + $0x20] sm:$0xf]
        %v360 = vld [vmem:[%s5 + $0x24] sm:$0xf]
        %v361 = vld [vmem:[%s5 + $0x28] sm:$0xf]
        %v362 = vld [vmem:[%s5 + $0x2c] sm:$0xf]
        %v363 = vld [vmem:[%s5 + $0x30] sm:$0xf]
        %v364 = vld [vmem:[%s5 + $0x34] sm:$0xf]
        %v365 = vld [vmem:[%s5 + $0x38] sm:$0xf]
        %v366 = vld [vmem:[%s5 + $0x3c] sm:$0xf]
        %v367 = vld [vmem:[%s1] sm:$0xff]
        %v368 = vld [vmem:[%s1 + $0x8] sm:$0xff]
        %v369 = vld [vmem:[%s1 + $0x10] sm:$0xff]
        %v370 = vld [vmem:[%s1 + $0x18] sm:$0xff]
        %v371 = vld [vmem:[%s1 + $0x20] sm:$0xff]
        %v372 = vld [vmem:[%s1 + $0x28] sm:$0xff]
        %v373 = vld [vmem:[%s1 + $0x30] sm:$0xff]
        %v374 = vld [vmem:[%s1 + $0x38] sm:$0xff]
        %v375 = vld [vmem:[%s1 + $0x40] sm:$0xff]
        %v376 = vld [vmem:[%s1 + $0x48] sm:$0xff]
        %v377 = vld [vmem:[%s1 + $0x50] sm:$0xff]
        %v378 = vld [vmem:[%s1 + $0x58] sm:$0xff]
        %v379 = vld [vmem:[%s1 + $0x60] sm:$0xff]
        %v380 = vld [vmem:[%s1 + $0x68] sm:$0xff]
        %v381 = vld [vmem:[%s1 + $0x70] sm:$0xff]
        %v382 = vld [vmem:[%s1 + $0x78] sm:$0xff]
        %v383 = vld [vmem:[%s331] sm:$0x77]
        %v384 = vld [vmem:[%s331 + $0x8] sm:$0x77]
        %v385 = vld [vmem:[%s2] sm:$0xff]
        %v386 = vld [vmem:[%s2 + $0x8] sm:$0xff]
        %v387 = vld [vmem:[%s2 + $0x10] sm:$0xff]
        %v388 = vld [vmem:[%s2 + $0x18] sm:$0xff]
        %v389 = vld [vmem:[%s2 + $0x20] sm:$0xff]
        %v390 = vld [vmem:[%s2 + $0x28] sm:$0xff]
        %v391 = vld [vmem:[%s2 + $0x30] sm:$0xff]
        %v392 = vld [vmem:[%s2 + $0x38] sm:$0xff]
        %v393 = vld [vmem:[%s2 + $0x40] sm:$0xff]
        %v394 = vld [vmem:[%s2 + $0x48] sm:$0xff]
        %v395 = vld [vmem:[%s2 + $0x50] sm:$0xff]
        %v396 = vld [vmem:[%s2 + $0x58] sm:$0xff]
        %v397 = vld [vmem:[%s2 + $0x60] sm:$0xff]
        %v398 = vld [vmem:[%s2 + $0x68] sm:$0xff]
        %v399 = vld [vmem:[%s2 + $0x70] sm:$0xff]
        %v400 = vld [vmem:[%s2 + $0x78] sm:$0xff]
        %402 = vset.pattern.permute.xlu0 0
        %403 = vperm.xlu0 %402, %v385
        %v404 = vpop.permute.xlu0 %403
        %407 = vset.pattern.permute.xlu0 0
        %408 = vperm.xlu0 %407, %v386
        %v409 = vpop.permute.xlu0 %408
        %412 = vset.pattern.permute.xlu0 0
        %413 = vperm.xlu0 %412, %v387
        %v414 = vpop.permute.xlu0 %413
        %417 = vset.pattern.permute.xlu0 0
        %418 = vperm.xlu0 %417, %v388
        %v419 = vpop.permute.xlu0 %418
        %422 = vset.pattern.permute.xlu0 0
        %423 = vperm.xlu0 %422, %v389
        %v424 = vpop.permute.xlu0 %423
        %427 = vset.pattern.permute.xlu0 0
        %428 = vperm.xlu0 %427, %v390
        %v429 = vpop.permute.xlu0 %428
        %432 = vset.pattern.permute.xlu0 0
        %433 = vperm.xlu0 %432, %v391
        %v434 = vpop.permute.xlu0 %433
        %437 = vset.pattern.permute.xlu0 0
        %438 = vperm.xlu0 %437, %v392
        %v439 = vpop.permute.xlu0 %438
        %442 = vset.pattern.permute.xlu0 0
        %443 = vperm.xlu0 %442, %v393
        %v444 = vpop.permute.xlu0 %443
        %447 = vset.pattern.permute.xlu0 0
        %448 = vperm.xlu0 %447, %v394
        %v449 = vpop.permute.xlu0 %448
        %452 = vset.pattern.permute.xlu0 0
        %453 = vperm.xlu0 %452, %v395
        %v454 = vpop.permute.xlu0 %453
        %457 = vset.pattern.permute.xlu0 0
        %458 = vperm.xlu0 %457, %v396
        %v459 = vpop.permute.xlu0 %458
        %462 = vset.pattern.permute.xlu0 0
        %463 = vperm.xlu0 %462, %v397
        %v464 = vpop.permute.xlu0 %463
        %467 = vset.pattern.permute.xlu0 0
        %468 = vperm.xlu0 %467, %v398
        %v469 = vpop.permute.xlu0 %468
        %472 = vset.pattern.permute.xlu0 0
        %473 = vperm.xlu0 %472, %v399
        %v474 = vpop.permute.xlu0 %473
        %477 = vset.pattern.permute.xlu0 0
        %478 = vperm.xlu0 %477, %v400
        %v479 = vpop.permute.xlu0 %478
        %v483 = vcombine.high %v383, %v383
        %v484 = vcombine.high %v384, %v384
        %vm485 = vcmask 23552
        %v487 = vsel %vm485, %v367, 0
        %v490 = vsel %vm485, %v368, 0
        %v493 = vsel %vm485, %v369, 0
        %v496 = vsel %vm485, %v370, 0
        %v499 = vsel %vm485, %v371, 0
        %v502 = vsel %vm485, %v372, 0
        %v505 = vsel %vm485, %v373, 0
        %v508 = vsel %vm485, %v374, 0
        %v511 = vsel %vm485, %v375, 0
        %v514 = vsel %vm485, %v376, 0
        %v517 = vsel %vm485, %v377, 0
        %v520 = vsel %vm485, %v378, 0
        %v523 = vsel %vm485, %v379, 0
        %v526 = vsel %vm485, %v380, 0
        %v529 = vsel %vm485, %v381, 0
        %v532 = vsel %vm485, %v382, 0
        %vm534 = vcmask 1042432
        %v535 = vsel %vm534, %v383, 0
        %v537 = vsel %vm534, %v483, 0
        %v539 = vsel %vm534, %v384, 0
        %v541 = vsel %vm534, %v484, 0
        %543 = vmatprep.subr.mxu0 0.0
        %544 = vmatpush1.msra.mxu0 0.0
        %545 = vmatprep.subr.mxu0 0.0
        %546 = vmatpush1.msra.mxu0 0.0
        %547 = vmatprep.subr.mxu0 0.0
        %548 = vmatpush1.msra.mxu0 0.0
        %549 = vmatprep.subr.mxu0 0.0
        %550 = vmatpush1.msra.mxu0 0.0
        %551 = vmatprep.subr.mxu0 0.0
        %552 = vmatpush1.msra.mxu0 0.0
        %553 = vmatprep.subr.mxu0 0.0
        %554 = vmatpush1.msra.mxu0 0.0
        %555 = vmatprep.subr.mxu0 0.0
        %556 = vmatpush1.msra.mxu0 0.0
        %557 = vmatprep.subr.mxu0 0.0
        %558 = vmatpush1.msra.mxu0 0.0
        %559 = vmatprep.subr.mxu0 0.0
        %560 = vmatpush1.msra.mxu0 0.0
        %561 = vmatprep.subr.mxu0 0.0
        %562 = vmatpush1.msra.mxu0 0.0
        %563 = vmatprep.subr.mxu0 0.0
        %564 = vmatpush1.msra.mxu0 0.0
        %565 = vmatprep.subr.mxu0 0.0
        %566 = vmatpush1.msra.mxu0 0.0
        %567 = vmatprep.subr.mxu0 0.0
        %568 = vmatpush1.msra.mxu0 0.0
        %569 = vmatprep.subr.mxu0 0.0
        %570 = vmatpush1.msra.mxu0 0.0
        %571 = vmatprep.subr.mxu0 0.0
        %572 = vmatpush1.msra.mxu0 0.0
        %573 = vmatprep.subr.mxu0 %v537
        %574 = vmatpush1.msra.mxu0 %v535
        %575 = vmatprep.subr.mxu0 0.0
        %576 = vmatpush2.msra.mxu0 0.0
        %577 = vmatprep.subr.mxu0 0.0
        %578 = vmatpush2.msra.mxu0 0.0
        %579 = vmatprep.subr.mxu0 0.0
        %580 = vmatpush2.msra.mxu0 0.0
        %581 = vmatprep.subr.mxu0 0.0
        %582 = vmatpush2.msra.mxu0 0.0
        %583 = vmatprep.subr.mxu0 0.0
        %584 = vmatpush2.msra.mxu0 0.0
        %585 = vmatprep.subr.mxu0 0.0
        %586 = vmatpush2.msra.mxu0 0.0
        %587 = vmatprep.subr.mxu0 0.0
        %588 = vmatpush2.msra.mxu0 0.0
        %589 = vmatprep.subr.mxu0 0.0
        %590 = vmatpush2.msra.mxu0 0.0
        %591 = vmatprep.subr.mxu0 0.0
        %592 = vmatpush2.msra.mxu0 0.0
        %593 = vmatprep.subr.mxu0 0.0
        %594 = vmatpush2.msra.mxu0 0.0
        %595 = vmatprep.subr.mxu0 0.0
        %596 = vmatpush2.msra.mxu0 0.0
        %597 = vmatprep.subr.mxu0 0.0
        %598 = vmatpush2.msra.mxu0 0.0
        %599 = vmatprep.subr.mxu0 0.0
        %600 = vmatpush2.msra.mxu0 0.0
        %601 = vmatprep.subr.mxu0 0.0
        %602 = vmatpush2.msra.mxu0 0.0
        %603 = vmatprep.subr.mxu0 0.0
        %604 = vmatpush2.msra.mxu0 0.0
        %605 = vmatprep.subr.mxu0 0.0
        %606 = vmatpush2.msra.mxu0 0.0
        %607 = vmatprep.mubr.f32.mxu0 0.0
        %608 = vmatmul.mubr.f32.gmra.mxu0 %v487
        %v609 = vpop.f32.mrf.mxu0
        %v610 = vadd.f32 %v404, %v609
        %v611 = vpop.f32.mrf.mxu0
        %v612 = vadd.f32 %v404, %v611
        %613 = vmatprep.mubr.f32.mxu0 0.0
        %614 = vmatmul.mubr.f32.gmra.mxu0 %v490
        %v615 = vpop.f32.mrf.mxu0
        %v616 = vadd.f32 %v409, %v615
        %v617 = vpop.f32.mrf.mxu0
        %v618 = vadd.f32 %v409, %v617
        %619 = vmatprep.mubr.f32.mxu0 0.0
        %620 = vmatmul.mubr.f32.gmra.mxu0 %v493
        %v621 = vpop.f32.mrf.mxu0
        %v622 = vadd.f32 %v414, %v621
        %v623 = vpop.f32.mrf.mxu0
        %v624 = vadd.f32 %v414, %v623
        %625 = vmatprep.mubr.f32.mxu0 0.0
        %626 = vmatmul.mubr.f32.gmra.mxu0 %v496
        %v627 = vpop.f32.mrf.mxu0
        %v628 = vadd.f32 %v419, %v627
        %v629 = vpop.f32.mrf.mxu0
        %v630 = vadd.f32 %v419, %v629
        %631 = vmatprep.mubr.f32.mxu0 0.0
        %632 = vmatmul.mubr.f32.gmra.mxu0 %v499
        %v633 = vpop.f32.mrf.mxu0
        %v634 = vadd.f32 %v424, %v633
        %v635 = vpop.f32.mrf.mxu0
        %v636 = vadd.f32 %v424, %v635
        %637 = vmatprep.mubr.f32.mxu0 0.0
        %638 = vmatmul.mubr.f32.gmra.mxu0 %v502
        %v639 = vpop.f32.mrf.mxu0
        %v640 = vadd.f32 %v429, %v639
        %v641 = vpop.f32.mrf.mxu0
        %v642 = vadd.f32 %v429, %v641
        %643 = vmatprep.mubr.f32.mxu0 0.0
        %644 = vmatmul.mubr.f32.gmra.mxu0 %v505
        %v645 = vpop.f32.mrf.mxu0
        %v646 = vadd.f32 %v434, %v645
        %v647 = vpop.f32.mrf.mxu0
        %v648 = vadd.f32 %v434, %v647
        %649 = vmatprep.mubr.f32.mxu0 0.0
        %650 = vmatmul.mubr.f32.gmra.mxu0 %v508
        %v651 = vpop.f32.mrf.mxu0
        %v652 = vadd.f32 %v439, %v651
        %v653 = vpop.f32.mrf.mxu0
        %v654 = vadd.f32 %v439, %v653
        %655 = vmatprep.mubr.f32.mxu0 0.0
        %656 = vmatmul.mubr.f32.gmra.mxu0 %v511
        %v657 = vpop.f32.mrf.mxu0
        %v658 = vadd.f32 %v444, %v657
        %v659 = vpop.f32.mrf.mxu0
        %v660 = vadd.f32 %v444, %v659
        %661 = vmatprep.mubr.f32.mxu0 0.0
        %662 = vmatmul.mubr.f32.gmra.mxu0 %v514
        %v663 = vpop.f32.mrf.mxu0
        %v664 = vadd.f32 %v449, %v663
        %v665 = vpop.f32.mrf.mxu0
        %v666 = vadd.f32 %v449, %v665
        %667 = vmatprep.mubr.f32.mxu0 0.0
        %668 = vmatmul.mubr.f32.gmra.mxu0 %v517
        %v669 = vpop.f32.mrf.mxu0
        %v670 = vadd.f32 %v454, %v669
        %v671 = vpop.f32.mrf.mxu0
        %v672 = vadd.f32 %v454, %v671
        %673 = vmatprep.mubr.f32.mxu0 0.0
        %674 = vmatmul.mubr.f32.gmra.mxu0 %v520
        %v675 = vpop.f32.mrf.mxu0
        %v676 = vadd.f32 %v459, %v675
        %v677 = vpop.f32.mrf.mxu0
        %v678 = vadd.f32 %v459, %v677
        %679 = vmatprep.mubr.f32.mxu0 0.0
        %680 = vmatmul.mubr.f32.gmra.mxu0 %v523
        %v681 = vpop.f32.mrf.mxu0
        %v682 = vadd.f32 %v464, %v681
        %v683 = vpop.f32.mrf.mxu0
        %v684 = vadd.f32 %v464, %v683
        %685 = vmatprep.mubr.f32.mxu0 0.0
        %686 = vmatmul.mubr.f32.gmra.mxu0 %v526
        %v687 = vpop.f32.mrf.mxu0
        %v688 = vadd.f32 %v469, %v687
        %v689 = vpop.f32.mrf.mxu0
        %v690 = vadd.f32 %v469, %v689
        %691 = vmatprep.mubr.f32.mxu0 0.0
        %692 = vmatmul.mubr.f32.gmra.mxu0 %v529
        %v693 = vpop.f32.mrf.mxu0
        %v694 = vadd.f32 %v474, %v693
        %v695 = vpop.f32.mrf.mxu0
        %v696 = vadd.f32 %v474, %v695
        %697 = vmatprep.mubr.f32.mxu0 0.0
        %698 = vmatmul.mubr.f32.gmra.mxu0 %v532
        %v699 = vpop.f32.mrf.mxu0
        %v700 = vadd.f32 %v479, %v699
        %v701 = vpop.f32.mrf.mxu0
        %v702 = vadd.f32 %v479, %v701
        %703 = vdwg.mxu0
        %704 = vmatprep.subr.mxu0 0.0
        %705 = vmatpush1.msra.mxu0 0.0
        %706 = vmatprep.subr.mxu0 0.0
        %707 = vmatpush1.msra.mxu0 0.0
        %708 = vmatprep.subr.mxu0 0.0
        %709 = vmatpush1.msra.mxu0 0.0
        %710 = vmatprep.subr.mxu0 0.0
        %711 = vmatpush1.msra.mxu0 0.0
        %712 = vmatprep.subr.mxu0 0.0
        %713 = vmatpush1.msra.mxu0 0.0
        %714 = vmatprep.subr.mxu0 0.0
        %715 = vmatpush1.msra.mxu0 0.0
        %716 = vmatprep.subr.mxu0 0.0
        %717 = vmatpush1.msra.mxu0 0.0
        %718 = vmatprep.subr.mxu0 0.0
        %719 = vmatpush1.msra.mxu0 0.0
        %720 = vmatprep.subr.mxu0 0.0
        %721 = vmatpush1.msra.mxu0 0.0
        %722 = vmatprep.subr.mxu0 0.0
        %723 = vmatpush1.msra.mxu0 0.0
        %724 = vmatprep.subr.mxu0 0.0
        %725 = vmatpush1.msra.mxu0 0.0
        %726 = vmatprep.subr.mxu0 0.0
        %727 = vmatpush1.msra.mxu0 0.0
        %728 = vmatprep.subr.mxu0 0.0
        %729 = vmatpush1.msra.mxu0 0.0
        %730 = vmatprep.subr.mxu0 0.0
        %731 = vmatpush1.msra.mxu0 0.0
        %732 = vmatprep.subr.mxu0 0.0
        %733 = vmatpush1.msra.mxu0 0.0
        %734 = vmatprep.subr.mxu0 %v541
        %735 = vmatpush1.msra.mxu0 %v539
        %736 = vmatprep.subr.mxu0 0.0
        %737 = vmatpush2.msra.mxu0 0.0
        %738 = vmatprep.subr.mxu0 0.0
        %739 = vmatpush2.msra.mxu0 0.0
        %740 = vmatprep.subr.mxu0 0.0
        %741 = vmatpush2.msra.mxu0 0.0
        %742 = vmatprep.subr.mxu0 0.0
        %743 = vmatpush2.msra.mxu0 0.0
        %744 = vmatprep.subr.mxu0 0.0
        %745 = vmatpush2.msra.mxu0 0.0
        %746 = vmatprep.subr.mxu0 0.0
        %747 = vmatpush2.msra.mxu0 0.0
        %748 = vmatprep.subr.mxu0 0.0
        %749 = vmatpush2.msra.mxu0 0.0
        %750 = vmatprep.subr.mxu0 0.0
        %751 = vmatpush2.msra.mxu0 0.0
        %752 = vmatprep.subr.mxu0 0.0
        %753 = vmatpush2.msra.mxu0 0.0
        %754 = vmatprep.subr.mxu0 0.0
        %755 = vmatpush2.msra.mxu0 0.0
        %756 = vmatprep.subr.mxu0 0.0
        %757 = vmatpush2.msra.mxu0 0.0
        %758 = vmatprep.subr.mxu0 0.0
        %759 = vmatpush2.msra.mxu0 0.0
        %760 = vmatprep.subr.mxu0 0.0
        %761 = vmatpush2.msra.mxu0 0.0
        %762 = vmatprep.subr.mxu0 0.0
        %763 = vmatpush2.msra.mxu0 0.0
        %764 = vmatprep.subr.mxu0 0.0
        %765 = vmatpush2.msra.mxu0 0.0
        %766 = vmatprep.subr.mxu0 0.0
        %767 = vmatpush2.msra.mxu0 0.0
        %768 = vmatprep.mubr.f32.mxu0 0.0
        %769 = vmatmul.mubr.f32.gmra.mxu0 %v487
        %v770 = vpop.f32.mrf.mxu0
        %v771 = vadd.f32 %v404, %v770
        %v772 = vpop.f32.mrf.mxu0
        %v773 = vadd.f32 %v404, %v772
        %774 = vmatprep.mubr.f32.mxu0 0.0
        %775 = vmatmul.mubr.f32.gmra.mxu0 %v490
        %v776 = vpop.f32.mrf.mxu0
        %v777 = vadd.f32 %v409, %v776
        %v778 = vpop.f32.mrf.mxu0
        %v779 = vadd.f32 %v409, %v778
        %780 = vmatprep.mubr.f32.mxu0 0.0
        %781 = vmatmul.mubr.f32.gmra.mxu0 %v493
        %v782 = vpop.f32.mrf.mxu0
        %v783 = vadd.f32 %v414, %v782
        %v784 = vpop.f32.mrf.mxu0
        %v785 = vadd.f32 %v414, %v784
        %786 = vmatprep.mubr.f32.mxu0 0.0
        %787 = vmatmul.mubr.f32.gmra.mxu0 %v496
        %v788 = vpop.f32.mrf.mxu0
        %v789 = vadd.f32 %v419, %v788
        %v790 = vpop.f32.mrf.mxu0
        %v791 = vadd.f32 %v419, %v790
        %792 = vmatprep.mubr.f32.mxu0 0.0
        %793 = vmatmul.mubr.f32.gmra.mxu0 %v499
        %v794 = vpop.f32.mrf.mxu0
        %v795 = vadd.f32 %v424, %v794
        %v796 = vpop.f32.mrf.mxu0
        %v797 = vadd.f32 %v424, %v796
        %798 = vmatprep.mubr.f32.mxu0 0.0
        %799 = vmatmul.mubr.f32.gmra.mxu0 %v502
        %v800 = vpop.f32.mrf.mxu0
        %v801 = vadd.f32 %v429, %v800
        %v802 = vpop.f32.mrf.mxu0
        %v803 = vadd.f32 %v429, %v802
        %804 = vmatprep.mubr.f32.mxu0 0.0
        %805 = vmatmul.mubr.f32.gmra.mxu0 %v505
        %v806 = vpop.f32.mrf.mxu0
        %v807 = vadd.f32 %v434, %v806
        %v808 = vpop.f32.mrf.mxu0
        %v809 = vadd.f32 %v434, %v808
        %810 = vmatprep.mubr.f32.mxu0 0.0
        %811 = vmatmul.mubr.f32.gmra.mxu0 %v508
        %v812 = vpop.f32.mrf.mxu0
        %v813 = vadd.f32 %v439, %v812
        %v814 = vpop.f32.mrf.mxu0
        %v815 = vadd.f32 %v439, %v814
        %816 = vmatprep.mubr.f32.mxu0 0.0
        %817 = vmatmul.mubr.f32.gmra.mxu0 %v511
        %v818 = vpop.f32.mrf.mxu0
        %v819 = vadd.f32 %v444, %v818
        %v820 = vpop.f32.mrf.mxu0
        %v821 = vadd.f32 %v444, %v820
        %822 = vmatprep.mubr.f32.mxu0 0.0
        %823 = vmatmul.mubr.f32.gmra.mxu0 %v514
        %v824 = vpop.f32.mrf.mxu0
        %v825 = vadd.f32 %v449, %v824
        %v826 = vpop.f32.mrf.mxu0
        %v827 = vadd.f32 %v449, %v826
        %828 = vmatprep.mubr.f32.mxu0 0.0
        %829 = vmatmul.mubr.f32.gmra.mxu0 %v517
        %v830 = vpop.f32.mrf.mxu0
        %v831 = vadd.f32 %v454, %v830
        %v832 = vpop.f32.mrf.mxu0
        %v833 = vadd.f32 %v454, %v832
        %834 = vmatprep.mubr.f32.mxu0 0.0
        %835 = vmatmul.mubr.f32.gmra.mxu0 %v520
        %v836 = vpop.f32.mrf.mxu0
        %v837 = vadd.f32 %v459, %v836
        %v838 = vpop.f32.mrf.mxu0
        %v839 = vadd.f32 %v459, %v838
        %840 = vmatprep.mubr.f32.mxu0 0.0
        %841 = vmatmul.mubr.f32.gmra.mxu0 %v523
        %v842 = vpop.f32.mrf.mxu0
        %v843 = vadd.f32 %v464, %v842
        %v844 = vpop.f32.mrf.mxu0
        %v845 = vadd.f32 %v464, %v844
        %846 = vmatprep.mubr.f32.mxu0 0.0
        %847 = vmatmul.mubr.f32.gmra.mxu0 %v526
        %v848 = vpop.f32.mrf.mxu0
        %v849 = vadd.f32 %v469, %v848
        %v850 = vpop.f32.mrf.mxu0
        %v851 = vadd.f32 %v469, %v850
        %852 = vmatprep.mubr.f32.mxu0 0.0
        %853 = vmatmul.mubr.f32.gmra.mxu0 %v529
        %v854 = vpop.f32.mrf.mxu0
        %v855 = vadd.f32 %v474, %v854
        %v856 = vpop.f32.mrf.mxu0
        %v857 = vadd.f32 %v474, %v856
        %858 = vmatprep.mubr.f32.mxu0 0.0
        %859 = vmatmul.mubr.f32.gmra.mxu0 %v532
        %v860 = vpop.f32.mrf.mxu0
        %v861 = vadd.f32 %v479, %v860
        %v862 = vpop.f32.mrf.mxu0
        %v863 = vadd.f32 %v479, %v862
        %864 = vdwg.mxu0
        %v865 = vmax.f32 %v610, 0.0
        %v866 = vmax.f32 %v612, 0.0
        %v867 = vmax.f32 %v771, 0.0
        %v868 = vmax.f32 %v773, 0.0
        %v869 = vmax.f32 %v616, 0.0
        %v870 = vmax.f32 %v618, 0.0
        %v871 = vmax.f32 %v777, 0.0
        %v872 = vmax.f32 %v779, 0.0
        %v873 = vmax.f32 %v622, 0.0
        %v874 = vmax.f32 %v624, 0.0
        %v875 = vmax.f32 %v783, 0.0
        %v876 = vmax.f32 %v785, 0.0
        %v877 = vmax.f32 %v628, 0.0
        %v878 = vmax.f32 %v630, 0.0
        %v879 = vmax.f32 %v789, 0.0
        %v880 = vmax.f32 %v791, 0.0
        %v881 = vmax.f32 %v634, 0.0
        %v882 = vmax.f32 %v636, 0.0
        %v883 = vmax.f32 %v795, 0.0
        %v884 = vmax.f32 %v797, 0.0
        %v885 = vmax.f32 %v640, 0.0
        %v886 = vmax.f32 %v642, 0.0
        %v887 = vmax.f32 %v801, 0.0
        %v888 = vmax.f32 %v803, 0.0
        %v889 = vmax.f32 %v646, 0.0
        %v890 = vmax.f32 %v648, 0.0
        %v891 = vmax.f32 %v807, 0.0
        %v892 = vmax.f32 %v809, 0.0
        %v893 = vmax.f32 %v652, 0.0
        %v894 = vmax.f32 %v654, 0.0
        %v895 = vmax.f32 %v813, 0.0
        %v896 = vmax.f32 %v815, 0.0
        %v897 = vmax.f32 %v658, 0.0
        %v898 = vmax.f32 %v660, 0.0
        %v899 = vmax.f32 %v819, 0.0
        %v900 = vmax.f32 %v821, 0.0
        %v901 = vmax.f32 %v664, 0.0
        %v902 = vmax.f32 %v666, 0.0
        %v903 = vmax.f32 %v825, 0.0
        %v904 = vmax.f32 %v827, 0.0
        %v905 = vmax.f32 %v670, 0.0
        %v906 = vmax.f32 %v672, 0.0
        %v907 = vmax.f32 %v831, 0.0
        %v908 = vmax.f32 %v833, 0.0
        %v909 = vmax.f32 %v676, 0.0
        %v910 = vmax.f32 %v678, 0.0
        %v911 = vmax.f32 %v837, 0.0
        %v912 = vmax.f32 %v839, 0.0
        %v913 = vmax.f32 %v682, 0.0
        %v914 = vmax.f32 %v684, 0.0
        %v915 = vmax.f32 %v843, 0.0
        %v916 = vmax.f32 %v845, 0.0
        %v917 = vmax.f32 %v688, 0.0
        %v918 = vmax.f32 %v690, 0.0
        %v919 = vmax.f32 %v849, 0.0
        %v920 = vmax.f32 %v851, 0.0
        %v921 = vmax.f32 %v694, 0.0
        %v922 = vmax.f32 %v696, 0.0
        %v923 = vmax.f32 %v855, 0.0
        %v924 = vmax.f32 %v857, 0.0
        %v925 = vmax.f32 %v700, 0.0
        %v926 = vmax.f32 %v702, 0.0
        %v927 = vmax.f32 %v861, 0.0
        %v928 = vmax.f32 %v863, 0.0
        %v929 = vpack.c.bf16 %v869, %v865
        %v930 = vpack.c.bf16 %v870, %v866
        %v931 = vpack.c.bf16 %v871, %v867
        %v932 = vpack.c.bf16 %v872, %v868
        %v933 = vpack.c.bf16 %v877, %v873
        %v934 = vpack.c.bf16 %v878, %v874
        %v935 = vpack.c.bf16 %v879, %v875
        %v936 = vpack.c.bf16 %v880, %v876
        %v937 = vpack.c.bf16 %v885, %v881
        %v938 = vpack.c.bf16 %v886, %v882
        %v939 = vpack.c.bf16 %v887, %v883
        %v940 = vpack.c.bf16 %v888, %v884
        %v941 = vpack.c.bf16 %v893, %v889
        %v942 = vpack.c.bf16 %v894, %v890
        %v943 = vpack.c.bf16 %v895, %v891
        %v944 = vpack.c.bf16 %v896, %v892
        %v945 = vpack.c.bf16 %v901, %v897
        %v946 = vpack.c.bf16 %v902, %v898
        %v947 = vpack.c.bf16 %v903, %v899
        %v948 = vpack.c.bf16 %v904, %v900
        %v949 = vpack.c.bf16 %v909, %v905
        %v950 = vpack.c.bf16 %v910, %v906
        %v951 = vpack.c.bf16 %v911, %v907
        %v952 = vpack.c.bf16 %v912, %v908
        %v953 = vpack.c.bf16 %v917, %v913
        %v954 = vpack.c.bf16 %v918, %v914
        %v955 = vpack.c.bf16 %v919, %v915
        %v956 = vpack.c.bf16 %v920, %v916
        %v957 = vpack.c.bf16 %v925, %v921
        %v958 = vpack.c.bf16 %v926, %v922
        %v959 = vpack.c.bf16 %v927, %v923
        %v960 = vpack.c.bf16 %v928, %v924
        %v961 = vld [vmem:[%s4] sm:$0xff]
        %v962 = vld [vmem:[%s4 + $0x8] sm:$0xff]
        %v963 = vld [vmem:[%s4 + $0x10] sm:$0xff]
        %v964 = vld [vmem:[%s4 + $0x18] sm:$0xff]
        %v965 = vld [vmem:[%s4 + $0x20] sm:$0xff]
        %v966 = vld [vmem:[%s4 + $0x28] sm:$0xff]
        %v967 = vld [vmem:[%s4 + $0x30] sm:$0xff]
        %v968 = vld [vmem:[%s4 + $0x38] sm:$0xff]
        %v969 = vld [vmem:[%s4 + $0x40] sm:$0xff]
        %v970 = vld [vmem:[%s4 + $0x48] sm:$0xff]
        %v971 = vld [vmem:[%s4 + $0x50] sm:$0xff]
        %v972 = vld [vmem:[%s4 + $0x58] sm:$0xff]
        %v973 = vld [vmem:[%s4 + $0x60] sm:$0xff]
        %v974 = vld [vmem:[%s4 + $0x68] sm:$0xff]
        %v975 = vld [vmem:[%s4 + $0x70] sm:$0xff]
        %v976 = vld [vmem:[%s4 + $0x78] sm:$0xff]
        %978 = vset.pattern.permute.xlu0 0
        %979 = vperm.xlu0 %978, %v961
        %v980 = vpop.permute.xlu0 %979
        %983 = vset.pattern.permute.xlu0 0
        %984 = vperm.xlu0 %983, %v962
        %v985 = vpop.permute.xlu0 %984
        %988 = vset.pattern.permute.xlu0 0
        %989 = vperm.xlu0 %988, %v963
        %v990 = vpop.permute.xlu0 %989
        %993 = vset.pattern.permute.xlu0 0
        %994 = vperm.xlu0 %993, %v964
        %v995 = vpop.permute.xlu0 %994
        %998 = vset.pattern.permute.xlu0 0
        %999 = vperm.xlu0 %998, %v965
        %v1000 = vpop.permute.xlu0 %999
        %1003 = vset.pattern.permute.xlu0 0
        %1004 = vperm.xlu0 %1003, %v966
        %v1005 = vpop.permute.xlu0 %1004
        %1008 = vset.pattern.permute.xlu0 0
        %1009 = vperm.xlu0 %1008, %v967
        %v1010 = vpop.permute.xlu0 %1009
        %1013 = vset.pattern.permute.xlu0 0
        %1014 = vperm.xlu0 %1013, %v968
        %v1015 = vpop.permute.xlu0 %1014
        %1018 = vset.pattern.permute.xlu0 0
        %1019 = vperm.xlu0 %1018, %v969
        %v1020 = vpop.permute.xlu0 %1019
        %1023 = vset.pattern.permute.xlu0 0
        %1024 = vperm.xlu0 %1023, %v970
        %v1025 = vpop.permute.xlu0 %1024
        %1028 = vset.pattern.permute.xlu0 0
        %1029 = vperm.xlu0 %1028, %v971
        %v1030 = vpop.permute.xlu0 %1029
        %1033 = vset.pattern.permute.xlu0 0
        %1034 = vperm.xlu0 %1033, %v972
        %v1035 = vpop.permute.xlu0 %1034
        %1038 = vset.pattern.permute.xlu0 0
        %1039 = vperm.xlu0 %1038, %v973
        %v1040 = vpop.permute.xlu0 %1039
        %1043 = vset.pattern.permute.xlu0 0
        %1044 = vperm.xlu0 %1043, %v974
        %v1045 = vpop.permute.xlu0 %1044
        %1048 = vset.pattern.permute.xlu0 0
        %1049 = vperm.xlu0 %1048, %v975
        %v1050 = vpop.permute.xlu0 %1049
        %1053 = vset.pattern.permute.xlu0 0
        %1054 = vperm.xlu0 %1053, %v976
        %v1055 = vpop.permute.xlu0 %1054
        %v1073 = vunpack.c.l.b16 %v335
        %v1074 = vunpack.c.l.b16 %v336
        %v1075 = vunpack.c.l.b16 %v337
        %v1076 = vunpack.c.l.b16 %v338
        %v1077 = vunpack.c.l.b16 %v339
        %v1078 = vunpack.c.l.b16 %v340
        %v1079 = vunpack.c.l.b16 %v341
        %v1080 = vunpack.c.l.b16 %v342
        %v1081 = vunpack.c.l.b16 %v343
        %v1082 = vunpack.c.l.b16 %v344
        %v1083 = vunpack.c.l.b16 %v345
        %v1084 = vunpack.c.l.b16 %v346
        %v1085 = vunpack.c.l.b16 %v347
        %v1086 = vunpack.c.l.b16 %v348
        %v1087 = vunpack.c.l.b16 %v349
        %v1088 = vunpack.c.l.b16 %v350
        %v1089 = vpack.c.b16 %v1074, %v1073
        %v1090 = vpack.c.b16 %v1076, %v1075
        %v1091 = vpack.c.b16 %v1078, %v1077
        %v1092 = vpack.c.b16 %v1080, %v1079
        %v1093 = vpack.c.b16 %v1082, %v1081
        %v1094 = vpack.c.b16 %v1084, %v1083
        %v1095 = vpack.c.b16 %v1086, %v1085
        %v1096 = vpack.c.b16 %v1088, %v1087
        %1105 = vmatprep.subr.bf16.mxu0 %v958
        %1106 = vmatpush1.bf16.msra.mxu0 %v957
        %1107 = vmatprep.subr.bf16.mxu0 %v954
        %1108 = vmatpush1.bf16.msra.mxu0 %v953
        %1109 = vmatprep.subr.bf16.mxu0 %v950
        %1110 = vmatpush1.bf16.msra.mxu0 %v949
        %1111 = vmatprep.subr.bf16.mxu0 %v946
        %1112 = vmatpush1.bf16.msra.mxu0 %v945
        %1113 = vmatprep.subr.bf16.mxu0 %v942
        %1114 = vmatpush1.bf16.msra.mxu0 %v941
        %1115 = vmatprep.subr.bf16.mxu0 %v938
        %1116 = vmatpush1.bf16.msra.mxu0 %v937
        %1117 = vmatprep.subr.bf16.mxu0 %v934
        %1118 = vmatpush1.bf16.msra.mxu0 %v933
        %1119 = vmatprep.subr.bf16.mxu0 %v930
        %1120 = vmatpush1.bf16.msra.mxu0 %v929
        %1121 = vmatprep.subr.bf16.mxu0 0
        %1122 = vmatpush2.bf16.msra.mxu0 0
        %1123 = vmatprep.subr.bf16.mxu0 0
        %1124 = vmatpush2.bf16.msra.mxu0 0
        %1125 = vmatprep.subr.bf16.mxu0 0
        %1126 = vmatpush2.bf16.msra.mxu0 0
        %1127 = vmatprep.subr.bf16.mxu0 0
        %1128 = vmatpush2.bf16.msra.mxu0 0
        %1129 = vmatprep.subr.bf16.mxu0 0
        %1130 = vmatpush2.bf16.msra.mxu0 0
        %1131 = vmatprep.subr.bf16.mxu0 0
        %1132 = vmatpush2.bf16.msra.mxu0 0
        %1133 = vmatprep.subr.bf16.mxu0 0
        %1134 = vmatpush2.bf16.msra.mxu0 0
        %1135 = vmatprep.subr.bf16.mxu0 0
        %1136 = vmatpush2.bf16.msra.mxu0 0
        %1137 = vmatprep.mubr.bf16.mxu0 0
        %1138 = vmatmul.mubr.bf16.gmra.mxu0 %v1089
        %v1139 = vpop.f32.mrf.mxu0
        %v1140 = vadd.f32 %v980, %v1139
        %v1141 = vpop.f32.mrf.mxu0
        %v1142 = vadd.f32 %v980, %v1141
        %v1143 = vpop.f32.mrf.mxu0
        %v1144 = vadd.f32 %v985, %v1143
        %v1145 = vpop.f32.mrf.mxu0
        %v1146 = vadd.f32 %v985, %v1145
        %1147 = vmatprep.mubr.bf16.mxu0 0
        %1148 = vmatmul.mubr.bf16.gmra.mxu0 %v1090
        %v1149 = vpop.f32.mrf.mxu0
        %v1150 = vadd.f32 %v990, %v1149
        %v1151 = vpop.f32.mrf.mxu0
        %v1152 = vadd.f32 %v990, %v1151
        %v1153 = vpop.f32.mrf.mxu0
        %v1154 = vadd.f32 %v995, %v1153
        %v1155 = vpop.f32.mrf.mxu0
        %v1156 = vadd.f32 %v995, %v1155
        %1157 = vmatprep.mubr.bf16.mxu0 0
        %1158 = vmatmul.mubr.bf16.gmra.mxu0 %v1091
        %v1159 = vpop.f32.mrf.mxu0
        %v1160 = vadd.f32 %v1000, %v1159
        %v1161 = vpop.f32.mrf.mxu0
        %v1162 = vadd.f32 %v1000, %v1161
        %v1163 = vpop.f32.mrf.mxu0
        %v1164 = vadd.f32 %v1005, %v1163
        %v1165 = vpop.f32.mrf.mxu0
        %v1166 = vadd.f32 %v1005, %v1165
        %1167 = vmatprep.mubr.bf16.mxu0 0
        %1168 = vmatmul.mubr.bf16.gmra.mxu0 %v1092
        %v1169 = vpop.f32.mrf.mxu0
        %v1170 = vadd.f32 %v1010, %v1169
        %v1171 = vpop.f32.mrf.mxu0
        %v1172 = vadd.f32 %v1010, %v1171
        %v1173 = vpop.f32.mrf.mxu0
        %v1174 = vadd.f32 %v1015, %v1173
        %v1175 = vpop.f32.mrf.mxu0
        %v1176 = vadd.f32 %v1015, %v1175
        %1177 = vmatprep.mubr.bf16.mxu0 0
        %1178 = vmatmul.mubr.bf16.gmra.mxu0 %v1093
        %v1179 = vpop.f32.mrf.mxu0
        %v1180 = vadd.f32 %v1020, %v1179
        %v1181 = vpop.f32.mrf.mxu0
        %v1182 = vadd.f32 %v1020, %v1181
        %v1183 = vpop.f32.mrf.mxu0
        %v1184 = vadd.f32 %v1025, %v1183
        %v1185 = vpop.f32.mrf.mxu0
        %v1186 = vadd.f32 %v1025, %v1185
        %1187 = vmatprep.mubr.bf16.mxu0 0
        %1188 = vmatmul.mubr.bf16.gmra.mxu0 %v1094
        %v1189 = vpop.f32.mrf.mxu0
        %v1190 = vadd.f32 %v1030, %v1189
        %v1191 = vpop.f32.mrf.mxu0
        %v1192 = vadd.f32 %v1030, %v1191
        %v1193 = vpop.f32.mrf.mxu0
        %v1194 = vadd.f32 %v1035, %v1193
        %v1195 = vpop.f32.mrf.mxu0
        %v1196 = vadd.f32 %v1035, %v1195
        %1197 = vmatprep.mubr.bf16.mxu0 0
        %1198 = vmatmul.mubr.bf16.gmra.mxu0 %v1095
        %v1199 = vpop.f32.mrf.mxu0
        %v1200 = vadd.f32 %v1040, %v1199
        %v1201 = vpop.f32.mrf.mxu0
        %v1202 = vadd.f32 %v1040, %v1201
        %v1203 = vpop.f32.mrf.mxu0
        %v1204 = vadd.f32 %v1045, %v1203
        %v1205 = vpop.f32.mrf.mxu0
        %v1206 = vadd.f32 %v1045, %v1205
        %1207 = vmatprep.mubr.bf16.mxu0 0
        %1208 = vmatmul.mubr.bf16.gmra.mxu0 %v1096
        %v1209 = vpop.f32.mrf.mxu0
        %v1210 = vadd.f32 %v1050, %v1209
        %v1211 = vpop.f32.mrf.mxu0
        %v1212 = vadd.f32 %v1050, %v1211
        %v1213 = vpop.f32.mrf.mxu0
        %v1214 = vadd.f32 %v1055, %v1213
        %v1215 = vpop.f32.mrf.mxu0
        %v1216 = vadd.f32 %v1055, %v1215
        %1217 = vdwg.mxu0
        %1218 = vmatprep.subr.bf16.mxu0 %v960
        %1219 = vmatpush1.bf16.msra.mxu0 %v959
        %1220 = vmatprep.subr.bf16.mxu0 %v956
        %1221 = vmatpush1.bf16.msra.mxu0 %v955
        %1222 = vmatprep.subr.bf16.mxu0 %v952
        %1223 = vmatpush1.bf16.msra.mxu0 %v951
        %1224 = vmatprep.subr.bf16.mxu0 %v948
        %1225 = vmatpush1.bf16.msra.mxu0 %v947
        %1226 = vmatprep.subr.bf16.mxu0 %v944
        %1227 = vmatpush1.bf16.msra.mxu0 %v943
        %1228 = vmatprep.subr.bf16.mxu0 %v940
        %1229 = vmatpush1.bf16.msra.mxu0 %v939
        %1230 = vmatprep.subr.bf16.mxu0 %v936
        %1231 = vmatpush1.bf16.msra.mxu0 %v935
        %1232 = vmatprep.subr.bf16.mxu0 %v932
        %1233 = vmatpush1.bf16.msra.mxu0 %v931
        %1234 = vmatprep.subr.bf16.mxu0 0
        %1235 = vmatpush2.bf16.msra.mxu0 0
        %1236 = vmatprep.subr.bf16.mxu0 0
        %1237 = vmatpush2.bf16.msra.mxu0 0
        %1238 = vmatprep.subr.bf16.mxu0 0
        %1239 = vmatpush2.bf16.msra.mxu0 0
        %1240 = vmatprep.subr.bf16.mxu0 0
        %1241 = vmatpush2.bf16.msra.mxu0 0
        %1242 = vmatprep.subr.bf16.mxu0 0
        %1243 = vmatpush2.bf16.msra.mxu0 0
        %1244 = vmatprep.subr.bf16.mxu0 0
        %1245 = vmatpush2.bf16.msra.mxu0 0
        %1246 = vmatprep.subr.bf16.mxu0 0
        %1247 = vmatpush2.bf16.msra.mxu0 0
        %1248 = vmatprep.subr.bf16.mxu0 0
        %1249 = vmatpush2.bf16.msra.mxu0 0
        %1250 = vmatprep.mubr.bf16.mxu0 0
        %1251 = vmatmul.mubr.bf16.gmra.mxu0 %v1089
        %v1252 = vpop.f32.mrf.mxu0
        %v1253 = vadd.f32 %v980, %v1252
        %v1254 = vpop.f32.mrf.mxu0
        %v1255 = vadd.f32 %v980, %v1254
        %v1256 = vpop.f32.mrf.mxu0
        %v1257 = vadd.f32 %v985, %v1256
        %v1258 = vpop.f32.mrf.mxu0
        %v1259 = vadd.f32 %v985, %v1258
        %1260 = vmatprep.mubr.bf16.mxu0 0
        %1261 = vmatmul.mubr.bf16.gmra.mxu0 %v1090
        %v1262 = vpop.f32.mrf.mxu0
        %v1263 = vadd.f32 %v990, %v1262
        %v1264 = vpop.f32.mrf.mxu0
        %v1265 = vadd.f32 %v990, %v1264
        %v1266 = vpop.f32.mrf.mxu0
        %v1267 = vadd.f32 %v995, %v1266
        %v1268 = vpop.f32.mrf.mxu0
        %v1269 = vadd.f32 %v995, %v1268
        %1270 = vmatprep.mubr.bf16.mxu0 0
        %1271 = vmatmul.mubr.bf16.gmra.mxu0 %v1091
        %v1272 = vpop.f32.mrf.mxu0
        %v1273 = vadd.f32 %v1000, %v1272
        %v1274 = vpop.f32.mrf.mxu0
        %v1275 = vadd.f32 %v1000, %v1274
        %v1276 = vpop.f32.mrf.mxu0
        %v1277 = vadd.f32 %v1005, %v1276
        %v1278 = vpop.f32.mrf.mxu0
        %v1279 = vadd.f32 %v1005, %v1278
        %1280 = vmatprep.mubr.bf16.mxu0 0
        %1281 = vmatmul.mubr.bf16.gmra.mxu0 %v1092
        %v1282 = vpop.f32.mrf.mxu0
        %v1283 = vadd.f32 %v1010, %v1282
        %v1284 = vpop.f32.mrf.mxu0
        %v1285 = vadd.f32 %v1010, %v1284
        %v1286 = vpop.f32.mrf.mxu0
        %v1287 = vadd.f32 %v1015, %v1286
        %v1288 = vpop.f32.mrf.mxu0
        %v1289 = vadd.f32 %v1015, %v1288
        %1290 = vmatprep.mubr.bf16.mxu0 0
        %1291 = vmatmul.mubr.bf16.gmra.mxu0 %v1093
        %v1292 = vpop.f32.mrf.mxu0
        %v1293 = vadd.f32 %v1020, %v1292
        %v1294 = vpop.f32.mrf.mxu0
        %v1295 = vadd.f32 %v1020, %v1294
        %v1296 = vpop.f32.mrf.mxu0
        %v1297 = vadd.f32 %v1025, %v1296
        %v1298 = vpop.f32.mrf.mxu0
        %v1299 = vadd.f32 %v1025, %v1298
        %1300 = vmatprep.mubr.bf16.mxu0 0
        %1301 = vmatmul.mubr.bf16.gmra.mxu0 %v1094
        %v1302 = vpop.f32.mrf.mxu0
        %v1303 = vadd.f32 %v1030, %v1302
        %v1304 = vpop.f32.mrf.mxu0
        %v1305 = vadd.f32 %v1030, %v1304
        %v1306 = vpop.f32.mrf.mxu0
        %v1307 = vadd.f32 %v1035, %v1306
        %v1308 = vpop.f32.mrf.mxu0
        %v1309 = vadd.f32 %v1035, %v1308
        %1310 = vmatprep.mubr.bf16.mxu0 0
        %1311 = vmatmul.mubr.bf16.gmra.mxu0 %v1095
        %v1312 = vpop.f32.mrf.mxu0
        %v1313 = vadd.f32 %v1040, %v1312
        %v1314 = vpop.f32.mrf.mxu0
        %v1315 = vadd.f32 %v1040, %v1314
        %v1316 = vpop.f32.mrf.mxu0
        %v1317 = vadd.f32 %v1045, %v1316
        %v1318 = vpop.f32.mrf.mxu0
        %v1319 = vadd.f32 %v1045, %v1318
        %1320 = vmatprep.mubr.bf16.mxu0 0
        %1321 = vmatmul.mubr.bf16.gmra.mxu0 %v1096
        %v1322 = vpop.f32.mrf.mxu0
        %v1323 = vadd.f32 %v1050, %v1322
        %v1324 = vpop.f32.mrf.mxu0
        %v1325 = vadd.f32 %v1050, %v1324
        %v1326 = vpop.f32.mrf.mxu0
        %v1327 = vadd.f32 %v1055, %v1326
        %v1328 = vpop.f32.mrf.mxu0
        %v1329 = vadd.f32 %v1055, %v1328
        %1330 = vdwg.mxu0
        %v1331 = vmax.f32 %v1140, 0.0
        %v1332 = vmax.f32 %v1142, 0.0
        %v1333 = vmax.f32 %v1253, 0.0
        %v1334 = vmax.f32 %v1255, 0.0
        %v1335 = vmax.f32 %v1144, 0.0
        %v1336 = vmax.f32 %v1146, 0.0
        %v1337 = vmax.f32 %v1257, 0.0
        %v1338 = vmax.f32 %v1259, 0.0
        %v1339 = vmax.f32 %v1150, 0.0
        %v1340 = vmax.f32 %v1152, 0.0
        %v1341 = vmax.f32 %v1263, 0.0
        %v1342 = vmax.f32 %v1265, 0.0
        %v1343 = vmax.f32 %v1154, 0.0
        %v1344 = vmax.f32 %v1156, 0.0
        %v1345 = vmax.f32 %v1267, 0.0
        %v1346 = vmax.f32 %v1269, 0.0
        %v1347 = vmax.f32 %v1160, 0.0
        %v1348 = vmax.f32 %v1162, 0.0
        %v1349 = vmax.f32 %v1273, 0.0
        %v1350 = vmax.f32 %v1275, 0.0
        %v1351 = vmax.f32 %v1164, 0.0
        %v1352 = vmax.f32 %v1166, 0.0
        %v1353 = vmax.f32 %v1277, 0.0
        %v1354 = vmax.f32 %v1279, 0.0
        %v1355 = vmax.f32 %v1170, 0.0
        %v1356 = vmax.f32 %v1172, 0.0
        %v1357 = vmax.f32 %v1283, 0.0
        %v1358 = vmax.f32 %v1285, 0.0
        %v1359 = vmax.f32 %v1174, 0.0
        %v1360 = vmax.f32 %v1176, 0.0
        %v1361 = vmax.f32 %v1287, 0.0
        %v1362 = vmax.f32 %v1289, 0.0
        %v1363 = vmax.f32 %v1180, 0.0
        %v1364 = vmax.f32 %v1182, 0.0
        %v1365 = vmax.f32 %v1293, 0.0
        %v1366 = vmax.f32 %v1295, 0.0
        %v1367 = vmax.f32 %v1184, 0.0
        %v1368 = vmax.f32 %v1186, 0.0
        %v1369 = vmax.f32 %v1297, 0.0
        %v1370 = vmax.f32 %v1299, 0.0
        %v1371 = vmax.f32 %v1190, 0.0
        %v1372 = vmax.f32 %v1192, 0.0
        %v1373 = vmax.f32 %v1303, 0.0
        %v1374 = vmax.f32 %v1305, 0.0
        %v1375 = vmax.f32 %v1194, 0.0
        %v1376 = vmax.f32 %v1196, 0.0
        %v1377 = vmax.f32 %v1307, 0.0
        %v1378 = vmax.f32 %v1309, 0.0
        %v1379 = vmax.f32 %v1200, 0.0
        %v1380 = vmax.f32 %v1202, 0.0
        %v1381 = vmax.f32 %v1313, 0.0
        %v1382 = vmax.f32 %v1315, 0.0
        %v1383 = vmax.f32 %v1204, 0.0
        %v1384 = vmax.f32 %v1206, 0.0
        %v1385 = vmax.f32 %v1317, 0.0
        %v1386 = vmax.f32 %v1319, 0.0
        %v1387 = vmax.f32 %v1210, 0.0
        %v1388 = vmax.f32 %v1212, 0.0
        %v1389 = vmax.f32 %v1323, 0.0
        %v1390 = vmax.f32 %v1325, 0.0
        %v1391 = vmax.f32 %v1214, 0.0
        %v1392 = vmax.f32 %v1216, 0.0
        %v1393 = vmax.f32 %v1327, 0.0
        %v1394 = vmax.f32 %v1329, 0.0
        %v1395 = vpack.c.bf16 %v1335, %v1331
        %v1396 = vpack.c.bf16 %v1336, %v1332
        %v1397 = vpack.c.bf16 %v1337, %v1333
        %v1398 = vpack.c.bf16 %v1338, %v1334
        %v1399 = vpack.c.bf16 %v1343, %v1339
        %v1400 = vpack.c.bf16 %v1344, %v1340
        %v1401 = vpack.c.bf16 %v1345, %v1341
        %v1402 = vpack.c.bf16 %v1346, %v1342
        %v1403 = vpack.c.bf16 %v1351, %v1347
        %v1404 = vpack.c.bf16 %v1352, %v1348
        %v1405 = vpack.c.bf16 %v1353, %v1349
        %v1406 = vpack.c.bf16 %v1354, %v1350
        %v1407 = vpack.c.bf16 %v1359, %v1355
        %v1408 = vpack.c.bf16 %v1360, %v1356
        %v1409 = vpack.c.bf16 %v1361, %v1357
        %v1410 = vpack.c.bf16 %v1362, %v1358
        %v1411 = vpack.c.bf16 %v1367, %v1363
        %v1412 = vpack.c.bf16 %v1368, %v1364
        %v1413 = vpack.c.bf16 %v1369, %v1365
        %v1414 = vpack.c.bf16 %v1370, %v1366
        %v1415 = vpack.c.bf16 %v1375, %v1371
        %v1416 = vpack.c.bf16 %v1376, %v1372
        %v1417 = vpack.c.bf16 %v1377, %v1373
        %v1418 = vpack.c.bf16 %v1378, %v1374
        %v1419 = vpack.c.bf16 %v1383, %v1379
        %v1420 = vpack.c.bf16 %v1384, %v1380
        %v1421 = vpack.c.bf16 %v1385, %v1381
        %v1422 = vpack.c.bf16 %v1386, %v1382
        %v1423 = vpack.c.bf16 %v1391, %v1387
        %v1424 = vpack.c.bf16 %v1392, %v1388
        %v1425 = vpack.c.bf16 %v1393, %v1389
        %v1426 = vpack.c.bf16 %v1394, %v1390
        %v1427 = vld [vmem:[%s6] sm:$0xff]
        %v1428 = vld [vmem:[%s6 + $0x8] sm:$0xff]
        %v1429 = vld [vmem:[%s6 + $0x10] sm:$0xff]
        %v1430 = vld [vmem:[%s6 + $0x18] sm:$0xff]
        %v1431 = vld [vmem:[%s6 + $0x20] sm:$0xff]
        %v1432 = vld [vmem:[%s6 + $0x28] sm:$0xff]
        %v1433 = vld [vmem:[%s6 + $0x30] sm:$0xff]
        %v1434 = vld [vmem:[%s6 + $0x38] sm:$0xff]
        %v1435 = vld [vmem:[%s6 + $0x40] sm:$0xff]
        %v1436 = vld [vmem:[%s6 + $0x48] sm:$0xff]
        %v1437 = vld [vmem:[%s6 + $0x50] sm:$0xff]
        %v1438 = vld [vmem:[%s6 + $0x58] sm:$0xff]
        %v1439 = vld [vmem:[%s6 + $0x60] sm:$0xff]
        %v1440 = vld [vmem:[%s6 + $0x68] sm:$0xff]
        %v1441 = vld [vmem:[%s6 + $0x70] sm:$0xff]
        %v1442 = vld [vmem:[%s6 + $0x78] sm:$0xff]
        %1444 = vset.pattern.permute.xlu0 0
        %1445 = vperm.xlu0 %1444, %v1427
        %v1446 = vpop.permute.xlu0 %1445
        %1449 = vset.pattern.permute.xlu0 0
        %1450 = vperm.xlu0 %1449, %v1428
        %v1451 = vpop.permute.xlu0 %1450
        %1454 = vset.pattern.permute.xlu0 0
        %1455 = vperm.xlu0 %1454, %v1429
        %v1456 = vpop.permute.xlu0 %1455
        %1459 = vset.pattern.permute.xlu0 0
        %1460 = vperm.xlu0 %1459, %v1430
        %v1461 = vpop.permute.xlu0 %1460
        %1464 = vset.pattern.permute.xlu0 0
        %1465 = vperm.xlu0 %1464, %v1431
        %v1466 = vpop.permute.xlu0 %1465
        %1469 = vset.pattern.permute.xlu0 0
        %1470 = vperm.xlu0 %1469, %v1432
        %v1471 = vpop.permute.xlu0 %1470
        %1474 = vset.pattern.permute.xlu0 0
        %1475 = vperm.xlu0 %1474, %v1433
        %v1476 = vpop.permute.xlu0 %1475
        %1479 = vset.pattern.permute.xlu0 0
        %1480 = vperm.xlu0 %1479, %v1434
        %v1481 = vpop.permute.xlu0 %1480
        %1484 = vset.pattern.permute.xlu0 0
        %1485 = vperm.xlu0 %1484, %v1435
        %v1486 = vpop.permute.xlu0 %1485
        %1489 = vset.pattern.permute.xlu0 0
        %1490 = vperm.xlu0 %1489, %v1436
        %v1491 = vpop.permute.xlu0 %1490
        %1494 = vset.pattern.permute.xlu0 0
        %1495 = vperm.xlu0 %1494, %v1437
        %v1496 = vpop.permute.xlu0 %1495
        %1499 = vset.pattern.permute.xlu0 0
        %1500 = vperm.xlu0 %1499, %v1438
        %v1501 = vpop.permute.xlu0 %1500
        %1504 = vset.pattern.permute.xlu0 0
        %1505 = vperm.xlu0 %1504, %v1439
        %v1506 = vpop.permute.xlu0 %1505
        %1509 = vset.pattern.permute.xlu0 0
        %1510 = vperm.xlu0 %1509, %v1440
        %v1511 = vpop.permute.xlu0 %1510
        %1514 = vset.pattern.permute.xlu0 0
        %1515 = vperm.xlu0 %1514, %v1441
        %v1516 = vpop.permute.xlu0 %1515
        %1519 = vset.pattern.permute.xlu0 0
        %1520 = vperm.xlu0 %1519, %v1442
        %v1521 = vpop.permute.xlu0 %1520
        %v1539 = vunpack.c.l.b16 %v351
        %v1540 = vunpack.c.l.b16 %v352
        %v1541 = vunpack.c.l.b16 %v353
        %v1542 = vunpack.c.l.b16 %v354
        %v1543 = vunpack.c.l.b16 %v355
        %v1544 = vunpack.c.l.b16 %v356
        %v1545 = vunpack.c.l.b16 %v357
        %v1546 = vunpack.c.l.b16 %v358
        %v1547 = vunpack.c.l.b16 %v359
        %v1548 = vunpack.c.l.b16 %v360
        %v1549 = vunpack.c.l.b16 %v361
        %v1550 = vunpack.c.l.b16 %v362
        %v1551 = vunpack.c.l.b16 %v363
        %v1552 = vunpack.c.l.b16 %v364
        %v1553 = vunpack.c.l.b16 %v365
        %v1554 = vunpack.c.l.b16 %v366
        %v1555 = vpack.c.b16 %v1540, %v1539
        %v1556 = vpack.c.b16 %v1542, %v1541
        %v1557 = vpack.c.b16 %v1544, %v1543
        %v1558 = vpack.c.b16 %v1546, %v1545
        %v1559 = vpack.c.b16 %v1548, %v1547
        %v1560 = vpack.c.b16 %v1550, %v1549
        %v1561 = vpack.c.b16 %v1552, %v1551
        %v1562 = vpack.c.b16 %v1554, %v1553
        %1571 = vmatprep.subr.bf16.mxu0 %v1424
        %1572 = vmatpush1.bf16.msra.mxu0 %v1423
        %1573 = vmatprep.subr.bf16.mxu0 %v1420
        %1574 = vmatpush1.bf16.msra.mxu0 %v1419
        %1575 = vmatprep.subr.bf16.mxu0 %v1416
        %1576 = vmatpush1.bf16.msra.mxu0 %v1415
        %1577 = vmatprep.subr.bf16.mxu0 %v1412
        %1578 = vmatpush1.bf16.msra.mxu0 %v1411
        %1579 = vmatprep.subr.bf16.mxu0 %v1408
        %1580 = vmatpush1.bf16.msra.mxu0 %v1407
        %1581 = vmatprep.subr.bf16.mxu0 %v1404
        %1582 = vmatpush1.bf16.msra.mxu0 %v1403
        %1583 = vmatprep.subr.bf16.mxu0 %v1400
        %1584 = vmatpush1.bf16.msra.mxu0 %v1399
        %1585 = vmatprep.subr.bf16.mxu0 %v1396
        %1586 = vmatpush1.bf16.msra.mxu0 %v1395
        %1587 = vmatprep.subr.bf16.mxu0 0
        %1588 = vmatpush2.bf16.msra.mxu0 0
        %1589 = vmatprep.subr.bf16.mxu0 0
        %1590 = vmatpush2.bf16.msra.mxu0 0
        %1591 = vmatprep.subr.bf16.mxu0 0
        %1592 = vmatpush2.bf16.msra.mxu0 0
        %1593 = vmatprep.subr.bf16.mxu0 0
        %1594 = vmatpush2.bf16.msra.mxu0 0
        %1595 = vmatprep.subr.bf16.mxu0 0
        %1596 = vmatpush2.bf16.msra.mxu0 0
        %1597 = vmatprep.subr.bf16.mxu0 0
        %1598 = vmatpush2.bf16.msra.mxu0 0
        %1599 = vmatprep.subr.bf16.mxu0 0
        %1600 = vmatpush2.bf16.msra.mxu0 0
        %1601 = vmatprep.subr.bf16.mxu0 0
        %1602 = vmatpush2.bf16.msra.mxu0 0
        %1603 = vmatprep.mubr.bf16.mxu0 0
        %1604 = vmatmul.mubr.bf16.gmra.mxu0 %v1555
        %v1605 = vpop.f32.mrf.mxu0
        %v1606 = vadd.f32 %v1446, %v1605
        %v1607 = vpop.f32.mrf.mxu0
        %v1608 = vadd.f32 %v1446, %v1607
        %v1609 = vpop.f32.mrf.mxu0
        %v1610 = vadd.f32 %v1451, %v1609
        %v1611 = vpop.f32.mrf.mxu0
        %v1612 = vadd.f32 %v1451, %v1611
        %1613 = vmatprep.mubr.bf16.mxu0 0
        %1614 = vmatmul.mubr.bf16.gmra.mxu0 %v1556
        %v1615 = vpop.f32.mrf.mxu0
        %v1616 = vadd.f32 %v1456, %v1615
        %v1617 = vpop.f32.mrf.mxu0
        %v1618 = vadd.f32 %v1456, %v1617
        %v1619 = vpop.f32.mrf.mxu0
        %v1620 = vadd.f32 %v1461, %v1619
        %v1621 = vpop.f32.mrf.mxu0
        %v1622 = vadd.f32 %v1461, %v1621
        %1623 = vmatprep.mubr.bf16.mxu0 0
        %1624 = vmatmul.mubr.bf16.gmra.mxu0 %v1557
        %v1625 = vpop.f32.mrf.mxu0
        %v1626 = vadd.f32 %v1466, %v1625
        %v1627 = vpop.f32.mrf.mxu0
        %v1628 = vadd.f32 %v1466, %v1627
        %v1629 = vpop.f32.mrf.mxu0
        %v1630 = vadd.f32 %v1471, %v1629
        %v1631 = vpop.f32.mrf.mxu0
        %v1632 = vadd.f32 %v1471, %v1631
        %1633 = vmatprep.mubr.bf16.mxu0 0
        %1634 = vmatmul.mubr.bf16.gmra.mxu0 %v1558
        %v1635 = vpop.f32.mrf.mxu0
        %v1636 = vadd.f32 %v1476, %v1635
        %v1637 = vpop.f32.mrf.mxu0
        %v1638 = vadd.f32 %v1476, %v1637
        %v1639 = vpop.f32.mrf.mxu0
        %v1640 = vadd.f32 %v1481, %v1639
        %v1641 = vpop.f32.mrf.mxu0
        %v1642 = vadd.f32 %v1481, %v1641
        %1643 = vmatprep.mubr.bf16.mxu0 0
        %1644 = vmatmul.mubr.bf16.gmra.mxu0 %v1559
        %v1645 = vpop.f32.mrf.mxu0
        %v1646 = vadd.f32 %v1486, %v1645
        %v1647 = vpop.f32.mrf.mxu0
        %v1648 = vadd.f32 %v1486, %v1647
        %v1649 = vpop.f32.mrf.mxu0
        %v1650 = vadd.f32 %v1491, %v1649
        %v1651 = vpop.f32.mrf.mxu0
        %v1652 = vadd.f32 %v1491, %v1651
        %1653 = vmatprep.mubr.bf16.mxu0 0
        %1654 = vmatmul.mubr.bf16.gmra.mxu0 %v1560
        %v1655 = vpop.f32.mrf.mxu0
        %v1656 = vadd.f32 %v1496, %v1655
        %v1657 = vpop.f32.mrf.mxu0
        %v1658 = vadd.f32 %v1496, %v1657
        %v1659 = vpop.f32.mrf.mxu0
        %v1660 = vadd.f32 %v1501, %v1659
        %v1661 = vpop.f32.mrf.mxu0
        %v1662 = vadd.f32 %v1501, %v1661
        %1663 = vmatprep.mubr.bf16.mxu0 0
        %1664 = vmatmul.mubr.bf16.gmra.mxu0 %v1561
        %v1665 = vpop.f32.mrf.mxu0
        %v1666 = vadd.f32 %v1506, %v1665
        %v1667 = vpop.f32.mrf.mxu0
        %v1668 = vadd.f32 %v1506, %v1667
        %v1669 = vpop.f32.mrf.mxu0
        %v1670 = vadd.f32 %v1511, %v1669
        %v1671 = vpop.f32.mrf.mxu0
        %v1672 = vadd.f32 %v1511, %v1671
        %1673 = vmatprep.mubr.bf16.mxu0 0
        %1674 = vmatmul.mubr.bf16.gmra.mxu0 %v1562
        %v1675 = vpop.f32.mrf.mxu0
        %v1676 = vadd.f32 %v1516, %v1675
        %v1677 = vpop.f32.mrf.mxu0
        %v1678 = vadd.f32 %v1516, %v1677
        %v1679 = vpop.f32.mrf.mxu0
        %v1680 = vadd.f32 %v1521, %v1679
        %v1681 = vpop.f32.mrf.mxu0
        %v1682 = vadd.f32 %v1521, %v1681
        %1683 = vdwg.mxu0
        %1684 = vmatprep.subr.bf16.mxu0 %v1426
        %1685 = vmatpush1.bf16.msra.mxu0 %v1425
        %1686 = vmatprep.subr.bf16.mxu0 %v1422
        %1687 = vmatpush1.bf16.msra.mxu0 %v1421
        %1688 = vmatprep.subr.bf16.mxu0 %v1418
        %1689 = vmatpush1.bf16.msra.mxu0 %v1417
        %1690 = vmatprep.subr.bf16.mxu0 %v1414
        %1691 = vmatpush1.bf16.msra.mxu0 %v1413
        %1692 = vmatprep.subr.bf16.mxu0 %v1410
        %1693 = vmatpush1.bf16.msra.mxu0 %v1409
        %1694 = vmatprep.subr.bf16.mxu0 %v1406
        %1695 = vmatpush1.bf16.msra.mxu0 %v1405
        %1696 = vmatprep.subr.bf16.mxu0 %v1402
        %1697 = vmatpush1.bf16.msra.mxu0 %v1401
        %1698 = vmatprep.subr.bf16.mxu0 %v1398
        %1699 = vmatpush1.bf16.msra.mxu0 %v1397
        %1700 = vmatprep.subr.bf16.mxu0 0
        %1701 = vmatpush2.bf16.msra.mxu0 0
        %1702 = vmatprep.subr.bf16.mxu0 0
        %1703 = vmatpush2.bf16.msra.mxu0 0
        %1704 = vmatprep.subr.bf16.mxu0 0
        %1705 = vmatpush2.bf16.msra.mxu0 0
        %1706 = vmatprep.subr.bf16.mxu0 0
        %1707 = vmatpush2.bf16.msra.mxu0 0
        %1708 = vmatprep.subr.bf16.mxu0 0
        %1709 = vmatpush2.bf16.msra.mxu0 0
        %1710 = vmatprep.subr.bf16.mxu0 0
        %1711 = vmatpush2.bf16.msra.mxu0 0
        %1712 = vmatprep.subr.bf16.mxu0 0
        %1713 = vmatpush2.bf16.msra.mxu0 0
        %1714 = vmatprep.subr.bf16.mxu0 0
        %1715 = vmatpush2.bf16.msra.mxu0 0
        %1716 = vmatprep.mubr.bf16.mxu0 0
        %1717 = vmatmul.mubr.bf16.gmra.mxu0 %v1555
        %v1718 = vpop.f32.mrf.mxu0
        %v1719 = vadd.f32 %v1446, %v1718
        %v1720 = vpop.f32.mrf.mxu0
        %v1721 = vadd.f32 %v1446, %v1720
        %v1722 = vpop.f32.mrf.mxu0
        %v1723 = vadd.f32 %v1451, %v1722
        %v1724 = vpop.f32.mrf.mxu0
        %v1725 = vadd.f32 %v1451, %v1724
        %1726 = vmatprep.mubr.bf16.mxu0 0
        %1727 = vmatmul.mubr.bf16.gmra.mxu0 %v1556
        %v1728 = vpop.f32.mrf.mxu0
        %v1729 = vadd.f32 %v1456, %v1728
        %v1730 = vpop.f32.mrf.mxu0
        %v1731 = vadd.f32 %v1456, %v1730
        %v1732 = vpop.f32.mrf.mxu0
        %v1733 = vadd.f32 %v1461, %v1732
        %v1734 = vpop.f32.mrf.mxu0
        %v1735 = vadd.f32 %v1461, %v1734
        %1736 = vmatprep.mubr.bf16.mxu0 0
        %1737 = vmatmul.mubr.bf16.gmra.mxu0 %v1557
        %v1738 = vpop.f32.mrf.mxu0
        %v1739 = vadd.f32 %v1466, %v1738
        %v1740 = vpop.f32.mrf.mxu0
        %v1741 = vadd.f32 %v1466, %v1740
        %v1742 = vpop.f32.mrf.mxu0
        %v1743 = vadd.f32 %v1471, %v1742
        %v1744 = vpop.f32.mrf.mxu0
        %v1745 = vadd.f32 %v1471, %v1744
        %1746 = vmatprep.mubr.bf16.mxu0 0
        %1747 = vmatmul.mubr.bf16.gmra.mxu0 %v1558
        %v1748 = vpop.f32.mrf.mxu0
        %v1749 = vadd.f32 %v1476, %v1748
        %v1750 = vpop.f32.mrf.mxu0
        %v1751 = vadd.f32 %v1476, %v1750
        %v1752 = vpop.f32.mrf.mxu0
        %v1753 = vadd.f32 %v1481, %v1752
        %v1754 = vpop.f32.mrf.mxu0
        %v1755 = vadd.f32 %v1481, %v1754
        %1756 = vmatprep.mubr.bf16.mxu0 0
        %1757 = vmatmul.mubr.bf16.gmra.mxu0 %v1559
        %v1758 = vpop.f32.mrf.mxu0
        %v1759 = vadd.f32 %v1486, %v1758
        %v1760 = vpop.f32.mrf.mxu0
        %v1761 = vadd.f32 %v1486, %v1760
        %v1762 = vpop.f32.mrf.mxu0
        %v1763 = vadd.f32 %v1491, %v1762
        %v1764 = vpop.f32.mrf.mxu0
        %v1765 = vadd.f32 %v1491, %v1764
        %1766 = vmatprep.mubr.bf16.mxu0 0
        %1767 = vmatmul.mubr.bf16.gmra.mxu0 %v1560
        %v1768 = vpop.f32.mrf.mxu0
        %v1769 = vadd.f32 %v1496, %v1768
        %v1770 = vpop.f32.mrf.mxu0
        %v1771 = vadd.f32 %v1496, %v1770
        %v1772 = vpop.f32.mrf.mxu0
        %v1773 = vadd.f32 %v1501, %v1772
        %v1774 = vpop.f32.mrf.mxu0
        %v1775 = vadd.f32 %v1501, %v1774
        %1776 = vmatprep.mubr.bf16.mxu0 0
        %1777 = vmatmul.mubr.bf16.gmra.mxu0 %v1561
        %v1778 = vpop.f32.mrf.mxu0
        %v1779 = vadd.f32 %v1506, %v1778
        %v1780 = vpop.f32.mrf.mxu0
        %v1781 = vadd.f32 %v1506, %v1780
        %v1782 = vpop.f32.mrf.mxu0
        %v1783 = vadd.f32 %v1511, %v1782
        %v1784 = vpop.f32.mrf.mxu0
        %v1785 = vadd.f32 %v1511, %v1784
        %1786 = vmatprep.mubr.bf16.mxu0 0
        %1787 = vmatmul.mubr.bf16.gmra.mxu0 %v1562
        %v1788 = vpop.f32.mrf.mxu0
        %v1789 = vadd.f32 %v1516, %v1788
        %v1790 = vpop.f32.mrf.mxu0
        %v1791 = vadd.f32 %v1516, %v1790
        %v1792 = vpop.f32.mrf.mxu0
        %v1793 = vadd.f32 %v1521, %v1792
        %v1794 = vpop.f32.mrf.mxu0
        %v1795 = vadd.f32 %v1521, %v1794
        %1796 = vdwg.mxu0
        %v1797 = vmax.f32 %v1606, 0.0
        %v1798 = vmax.f32 %v1608, 0.0
        %v1799 = vmax.f32 %v1719, 0.0
        %v1800 = vmax.f32 %v1721, 0.0
        %v1801 = vmax.f32 %v1610, 0.0
        %v1802 = vmax.f32 %v1612, 0.0
        %v1803 = vmax.f32 %v1723, 0.0
        %v1804 = vmax.f32 %v1725, 0.0
        %v1805 = vmax.f32 %v1616, 0.0
        %v1806 = vmax.f32 %v1618, 0.0
        %v1807 = vmax.f32 %v1729, 0.0
        %v1808 = vmax.f32 %v1731, 0.0
        %v1809 = vmax.f32 %v1620, 0.0
        %v1810 = vmax.f32 %v1622, 0.0
        %v1811 = vmax.f32 %v1733, 0.0
        %v1812 = vmax.f32 %v1735, 0.0
        %v1813 = vmax.f32 %v1626, 0.0
        %v1814 = vmax.f32 %v1628, 0.0
        %v1815 = vmax.f32 %v1739, 0.0
        %v1816 = vmax.f32 %v1741, 0.0
        %v1817 = vmax.f32 %v1630, 0.0
        %v1818 = vmax.f32 %v1632, 0.0
        %v1819 = vmax.f32 %v1743, 0.0
        %v1820 = vmax.f32 %v1745, 0.0
        %v1821 = vmax.f32 %v1636, 0.0
        %v1822 = vmax.f32 %v1638, 0.0
        %v1823 = vmax.f32 %v1749, 0.0
        %v1824 = vmax.f32 %v1751, 0.0
        %v1825 = vmax.f32 %v1640, 0.0
        %v1826 = vmax.f32 %v1642, 0.0
        %v1827 = vmax.f32 %v1753, 0.0
        %v1828 = vmax.f32 %v1755, 0.0
        %v1829 = vmax.f32 %v1646, 0.0
        %v1830 = vmax.f32 %v1648, 0.0
        %v1831 = vmax.f32 %v1759, 0.0
        %v1832 = vmax.f32 %v1761, 0.0
        %v1833 = vmax.f32 %v1650, 0.0
        %v1834 = vmax.f32 %v1652, 0.0
        %v1835 = vmax.f32 %v1763, 0.0
        %v1836 = vmax.f32 %v1765, 0.0
        %v1837 = vmax.f32 %v1656, 0.0
        %v1838 = vmax.f32 %v1658, 0.0
        %v1839 = vmax.f32 %v1769, 0.0
        %v1840 = vmax.f32 %v1771, 0.0
        %v1841 = vmax.f32 %v1660, 0.0
        %v1842 = vmax.f32 %v1662, 0.0
        %v1843 = vmax.f32 %v1773, 0.0
        %v1844 = vmax.f32 %v1775, 0.0
        %v1845 = vmax.f32 %v1666, 0.0
        %v1846 = vmax.f32 %v1668, 0.0
        %v1847 = vmax.f32 %v1779, 0.0
        %v1848 = vmax.f32 %v1781, 0.0
        %v1849 = vmax.f32 %v1670, 0.0
        %v1850 = vmax.f32 %v1672, 0.0
        %v1851 = vmax.f32 %v1783, 0.0
        %v1852 = vmax.f32 %v1785, 0.0
        %v1853 = vmax.f32 %v1676, 0.0
        %v1854 = vmax.f32 %v1678, 0.0
        %v1855 = vmax.f32 %v1789, 0.0
        %v1856 = vmax.f32 %v1791, 0.0
        %v1857 = vmax.f32 %v1680, 0.0
        %v1858 = vmax.f32 %v1682, 0.0
        %v1859 = vmax.f32 %v1793, 0.0
        %v1860 = vmax.f32 %v1795, 0.0
        %v1861 = vld [vmem:[%s7] sm:$0x7]
        %v1862 = vld [vmem:[%s8] sm:$0x7]
        %1864 = vset.pattern.permute.xlu0 0
        %1865 = vperm.xlu0 %1864, %v1862
        %v1866 = vpop.permute.xlu0 %1865
        %1868 = vmatprep.subr.mxu0 %v1858
        %1869 = vmatpush1.msra.mxu0 %v1857
        %1870 = vmatprep.subr.mxu0 %v1854
        %1871 = vmatpush1.msra.mxu0 %v1853
        %1872 = vmatprep.subr.mxu0 %v1850
        %1873 = vmatpush1.msra.mxu0 %v1849
        %1874 = vmatprep.subr.mxu0 %v1846
        %1875 = vmatpush1.msra.mxu0 %v1845
        %1876 = vmatprep.subr.mxu0 %v1842
        %1877 = vmatpush1.msra.mxu0 %v1841
        %1878 = vmatprep.subr.mxu0 %v1838
        %1879 = vmatpush1.msra.mxu0 %v1837
        %1880 = vmatprep.subr.mxu0 %v1834
        %1881 = vmatpush1.msra.mxu0 %v1833
        %1882 = vmatprep.subr.mxu0 %v1830
        %1883 = vmatpush1.msra.mxu0 %v1829
        %1884 = vmatprep.subr.mxu0 %v1826
        %1885 = vmatpush1.msra.mxu0 %v1825
        %1886 = vmatprep.subr.mxu0 %v1822
        %1887 = vmatpush1.msra.mxu0 %v1821
        %1888 = vmatprep.subr.mxu0 %v1818
        %1889 = vmatpush1.msra.mxu0 %v1817
        %1890 = vmatprep.subr.mxu0 %v1814
        %1891 = vmatpush1.msra.mxu0 %v1813
        %1892 = vmatprep.subr.mxu0 %v1810
        %1893 = vmatpush1.msra.mxu0 %v1809
        %1894 = vmatprep.subr.mxu0 %v1806
        %1895 = vmatpush1.msra.mxu0 %v1805
        %1896 = vmatprep.subr.mxu0 %v1802
        %1897 = vmatpush1.msra.mxu0 %v1801
        %1898 = vmatprep.subr.mxu0 %v1798
        %1899 = vmatpush1.msra.mxu0 %v1797
        %1900 = vmatprep.subr.mxu0 0.0
        %1901 = vmatpush2.msra.mxu0 0.0
        %1902 = vmatprep.subr.mxu0 0.0
        %1903 = vmatpush2.msra.mxu0 0.0
        %1904 = vmatprep.subr.mxu0 0.0
        %1905 = vmatpush2.msra.mxu0 0.0
        %1906 = vmatprep.subr.mxu0 0.0
        %1907 = vmatpush2.msra.mxu0 0.0
        %1908 = vmatprep.subr.mxu0 0.0
        %1909 = vmatpush2.msra.mxu0 0.0
        %1910 = vmatprep.subr.mxu0 0.0
        %1911 = vmatpush2.msra.mxu0 0.0
        %1912 = vmatprep.subr.mxu0 0.0
        %1913 = vmatpush2.msra.mxu0 0.0
        %1914 = vmatprep.subr.mxu0 0.0
        %1915 = vmatpush2.msra.mxu0 0.0
        %1916 = vmatprep.subr.mxu0 0.0
        %1917 = vmatpush2.msra.mxu0 0.0
        %1918 = vmatprep.subr.mxu0 0.0
        %1919 = vmatpush2.msra.mxu0 0.0
        %1920 = vmatprep.subr.mxu0 0.0
        %1921 = vmatpush2.msra.mxu0 0.0
        %1922 = vmatprep.subr.mxu0 0.0
        %1923 = vmatpush2.msra.mxu0 0.0
        %1924 = vmatprep.subr.mxu0 0.0
        %1925 = vmatpush2.msra.mxu0 0.0
        %1926 = vmatprep.subr.mxu0 0.0
        %1927 = vmatpush2.msra.mxu0 0.0
        %1928 = vmatprep.subr.mxu0 0.0
        %1929 = vmatpush2.msra.mxu0 0.0
        %1930 = vmatprep.subr.mxu0 0.0
        %1931 = vmatpush2.msra.mxu0 0.0
        %1932 = vmatprep.mubr.f32.mxu0 0.0
        %1933 = vmatmul.mubr.f32.gmra.mxu0 %v1861
        %v1934 = vpop.f32.mrf.mxu0
        %v1935 = vadd.f32 %v1866, %v1934
        %v1936 = vpop.f32.mrf.mxu0
        %v1937 = vadd.f32 %v1866, %v1936
        %1938 = vdwg.mxu0
        %1939 = vmatprep.subr.mxu0 %v1860
        %1940 = vmatpush1.msra.mxu0 %v1859
        %1941 = vmatprep.subr.mxu0 %v1856
        %1942 = vmatpush1.msra.mxu0 %v1855
        %1943 = vmatprep.subr.mxu0 %v1852
        %1944 = vmatpush1.msra.mxu0 %v1851
        %1945 = vmatprep.subr.mxu0 %v1848
        %1946 = vmatpush1.msra.mxu0 %v1847
        %1947 = vmatprep.subr.mxu0 %v1844
        %1948 = vmatpush1.msra.mxu0 %v1843
        %1949 = vmatprep.subr.mxu0 %v1840
        %1950 = vmatpush1.msra.mxu0 %v1839
        %1951 = vmatprep.subr.mxu0 %v1836
        %1952 = vmatpush1.msra.mxu0 %v1835
        %1953 = vmatprep.subr.mxu0 %v1832
        %1954 = vmatpush1.msra.mxu0 %v1831
        %1955 = vmatprep.subr.mxu0 %v1828
        %1956 = vmatpush1.msra.mxu0 %v1827
        %1957 = vmatprep.subr.mxu0 %v1824
        %1958 = vmatpush1.msra.mxu0 %v1823
        %1959 = vmatprep.subr.mxu0 %v1820
        %1960 = vmatpush1.msra.mxu0 %v1819
        %1961 = vmatprep.subr.mxu0 %v1816
        %1962 = vmatpush1.msra.mxu0 %v1815
        %1963 = vmatprep.subr.mxu0 %v1812
        %1964 = vmatpush1.msra.mxu0 %v1811
        %1965 = vmatprep.subr.mxu0 %v1808
        %1966 = vmatpush1.msra.mxu0 %v1807
        %1967 = vmatprep.subr.mxu0 %v1804
        %1968 = vmatpush1.msra.mxu0 %v1803
        %1969 = vmatprep.subr.mxu0 %v1800
        %1970 = vmatpush1.msra.mxu0 %v1799
        %1971 = vmatprep.subr.mxu0 0.0
        %1972 = vmatpush2.msra.mxu0 0.0
        %1973 = vmatprep.subr.mxu0 0.0
        %1974 = vmatpush2.msra.mxu0 0.0
        %1975 = vmatprep.subr.mxu0 0.0
        %1976 = vmatpush2.msra.mxu0 0.0
        %1977 = vmatprep.subr.mxu0 0.0
        %1978 = vmatpush2.msra.mxu0 0.0
        %1979 = vmatprep.subr.mxu0 0.0
        %1980 = vmatpush2.msra.mxu0 0.0
        %1981 = vmatprep.subr.mxu0 0.0
        %1982 = vmatpush2.msra.mxu0 0.0
        %1983 = vmatprep.subr.mxu0 0.0
        %1984 = vmatpush2.msra.mxu0 0.0
        %1985 = vmatprep.subr.mxu0 0.0
        %1986 = vmatpush2.msra.mxu0 0.0
        %1987 = vmatprep.subr.mxu0 0.0
        %1988 = vmatpush2.msra.mxu0 0.0
        %1989 = vmatprep.subr.mxu0 0.0
        %1990 = vmatpush2.msra.mxu0 0.0
        %1991 = vmatprep.subr.mxu0 0.0
        %1992 = vmatpush2.msra.mxu0 0.0
        %1993 = vmatprep.subr.mxu0 0.0
        %1994 = vmatpush2.msra.mxu0 0.0
        %1995 = vmatprep.subr.mxu0 0.0
        %1996 = vmatpush2.msra.mxu0 0.0
        %1997 = vmatprep.subr.mxu0 0.0
        %1998 = vmatpush2.msra.mxu0 0.0
        %1999 = vmatprep.subr.mxu0 0.0
        %2000 = vmatpush2.msra.mxu0 0.0
        %2001 = vmatprep.subr.mxu0 0.0
        %2002 = vmatpush2.msra.mxu0 0.0
        %2003 = vmatprep.mubr.f32.mxu0 0.0
        %2004 = vmatmul.mubr.f32.gmra.mxu0 %v1861
        %v2005 = vpop.f32.mrf.mxu0
        %v2006 = vadd.f32 %v1866, %v2005
        %v2007 = vpop.f32.mrf.mxu0
        %v2008 = vadd.f32 %v1866, %v2007
        %2009 = vdwg.mxu0
        %v2014 = vcombine.low %v1935, %v1937
        %v2015 = vcombine.low %v2006, %v2008
        %2018 = vst [vmem:[%s326] sm:$0x77] %v2014
        %2019 = vst [vmem:[%s326 + $0x8] sm:$0x77] %v2015
        %s2020 = sand.u32 %s225, 1
        %s2021 = scalar_lea.sflag [#allocation3], %s2020
        %s2022 = sand.u32 %s225, 1
        %s2023 = smul.addr %s2022, 16
        %s2024 = scalar_lea.vmem [#allocation2], %s2023
        // Predicated region
        $region57: #{field_forward.1} parent=55 // pred_check
          %p2025 = pneg %p235
        $region58: #{field_forward.1} parent=55 // pred_check_branch
          %2027 = sbr.rel (%p2025) target = $region60
        $region59: #{field_forward.1} parent=55 // pred_region
          %s2028 = smul.u32 4, %s23
          %s2030 = ssub.s32 256, 256
          %2031 = vsyncadd %s2021, %s2030
          %s2032 = smul.addr %s2028, 64
          %s2033 = scalar_lea.hbm %s9, %s2032
          %s2035 = sshll.u32 %s2024, 4
          %s2036 = int_to_ptr.vmem [resolvable:$true] %s2035
          %2038 = dma.vmem_to_hbm [thread:$0]  %s2036, 256, %s2033, %s2021
        $region60: #{field_forward.1} parent=55 // pred_fallthru
          _
      $region56: #{field_forward.1} parent=5 // pred_fallthru
        _
      %p2039 = scmp.le.s32.totalorder 2, %s18
      // Predicated region
      $region61: #{field_forward.1} parent=5 // pred_check
        %p2040 = pneg %p2039
      $region62: #{field_forward.1} parent=5 // pred_check_branch
        %2042 = sbr.rel (%p2040) target = $region64
      $region63: #{field_forward.1} parent=5 // pred_region
        %s2043 = ssub.s32 %s18, 2
        // Predicated region
        $region65: #{field_forward.1} parent=63 // pred_check
          %p2044 = pneg %p241
        $region66: #{field_forward.1} parent=63 // pred_check_branch
          %2046 = sbr.rel (%p2044) target = $region68
        $region67: #{field_forward.1} parent=63 // pred_region
          %s2047 = sand.u32 %s226, 1
          %s2048 = scalar_lea.sflag [#allocation3], %s2047
          %s2049 = sand.u32 %s226, 1
          %s2050 = smul.addr %s2049, 16
          %s2051 = scalar_lea.vmem [#allocation2], %s2050
          %2052 = dma.done %s2048, 256
        $region68: #{field_forward.1} parent=63 // pred_fallthru
          _
      $region64: #{field_forward.1} parent=5 // pred_fallthru
        _
    $region6: #{field_forward.1} parent=1 // loop_footer
      %s22 = sadd.s32 1, %s18
    $region7: #{field_forward.1} parent=1 // loop_footer_branch
      %17 = sbr.rel target = $region3
    $region8: #{field_forward.1} parent=1 // loop_exit
      _
    %2053 = vsyncpa [#allocation3], 1
    %s2054 = scalar_lea.sflag [#allocation3], 1
    %2055 = vsyncpa %s2054, 1

</llo_original>
